<compile_context>
chip_gen: v7x
topology: tpu7x:2x2x1
jax: 0.10.0
libtpu: 0.0.40
codegen_flags: <defaults>
</compile_context>

<pallas_src>
import functools
import math

import jax
import jax.numpy as jnp
from jax.experimental import pallas as pl
from jax.experimental.pallas import tpu as pltpu


def _flash_mha_kernel(xq_ref, xkv_ref, w_ref, b_ref, o_ref,
                      q_scr, acc_scr, m_scr, l_scr,
                      *, num_heads, head_dim, d_out, tq, tk, compute_dtype):
    """Grid = (batch, q_tile, kv_tile); kv_tile is the (arbitrary) reduction axis."""
    qi = pl.program_id(1)
    ki = pl.program_id(2)
    nk = pl.num_programs(2)

    q_start = qi * tq          # global index of first query row in this tile
    kv_start = ki * tk         # global index of first key row in this tile

    # --- init: project Q for this query tile once, reset online-softmax state.
    @pl.when(ki == 0)
    def _init():
        xq = xq_ref[0].astype(compute_dtype)                  # (tq, d_in)
        wq = w_ref[:, :d_out].astype(compute_dtype)           # (d_in, d_out)
        q = jnp.dot(xq, wq, preferred_element_type=jnp.float32)
        q = q + b_ref[:, :d_out]
        # Fold 1/sqrt(head_dim) into Q (T*d_out mults instead of T*T divides).
        q_scr[...] = q * jnp.float32(1.0 / math.sqrt(head_dim))
        m_scr[...] = jnp.full_like(m_scr, -jnp.inf)
        l_scr[...] = jnp.zeros_like(l_scr)
        acc_scr[...] = jnp.zeros_like(acc_scr)

    # --- main: skip KV blocks that lie entirely above the causal diagonal.
    @pl.when(kv_start <= q_start + (tq - 1))
    def _compute():
        xkv = xkv_ref[0].astype(compute_dtype)                # (tk, d_in)
        wkv = w_ref[:, d_out:].astype(compute_dtype)          # (d_in, 2*d_out)
        kv = jnp.dot(xkv, wkv, preferred_element_type=jnp.float32)
        kv = kv + b_ref[:, d_out:]
        k = kv[:, :d_out]                                     # (tk, d_out)
        v = kv[:, d_out:]                                     # (tk, d_out)

        # Causal mask for this (q_tile, kv_tile) block.
        row = q_start + jax.lax.broadcasted_iota(jnp.int32, (tq, tk), 0)
        col = kv_start + jax.lax.broadcasted_iota(jnp.int32, (tq, tk), 1)
        keep = col <= row

        for h in range(num_heads):
            sl = slice(h * head_dim, (h + 1) * head_dim)
            qh = q_scr[:, sl].astype(compute_dtype)           # (tq, hd), pre-scaled
            kh = k[:, sl].astype(compute_dtype)               # (tk, hd)
            vh = v[:, sl]                                     # (tk, hd)

            # scores = Q_h @ K_h^T (contraction over head_dim, no transpose op)
            s = jax.lax.dot_general(qh, kh, (((1,), (1,)), ((), ())),
                                    preferred_element_type=jnp.float32)
            s = jnp.where(keep, s, -jnp.inf)

            m_prev = m_scr[h]                                 # (tq, 1)
            m_new = jnp.maximum(m_prev, jnp.max(s, axis=-1, keepdims=True))
            alpha = jnp.exp(m_prev - m_new)
            p = jnp.exp(s - m_new)
            l_scr[h] = alpha * l_scr[h] + jnp.sum(p, axis=-1, keepdims=True)
            acc_scr[h] = alpha * acc_scr[h] + jnp.dot(
                p.astype(compute_dtype), vh.astype(compute_dtype),
                preferred_element_type=jnp.float32)
            m_scr[h] = m_new

    # --- finalize: normalize and emit one lane-dense (tq, d_out) store.
    @pl.when(ki == nk - 1)
    def _finalize():
        outs = []
        for h in range(num_heads):
            # Exact divide: pl.reciprocal(approx=True) is only ~bf16 accurate
            # and broke the parity check.
            inv_l = 1.0 / l_scr[h]
            outs.append(acc_scr[h] * inv_l)
        o_ref[0] = jnp.concatenate(outs, axis=-1).astype(o_ref.dtype)


def _choose_tile(t, pref):
    """Sequence tile: `pref` if it divides t, else a single full-length tile."""
    if t % pref == 0:
        return pref
    if t <= pref:
        return t
    # TODO(synk): pad ragged sequences instead of falling back to one big tile.
    return t


def multi_head_attention(x, wq, wk, wv, bq, bk, bv, *, num_heads,
                         q_tile=128, kv_tile=128,
                         compute_dtype=jnp.float32):
    """x: (B, T, d_in); w*: (d_out, d_in) torch nn.Linear layout; b*: (d_out,).

    Set compute_dtype=jnp.bfloat16 on v6e/v7x for bf16 MXU inputs with f32
    accumulation.
    """
    batch, num_tokens, d_in = x.shape
    d_out = wq.shape[0]
    assert d_out % num_heads == 0
    head_dim = d_out // num_heads

    # Pack the three torch-layout weights into one fused (d_in, 3*d_out) matrix
    # with columns [Q | K | V]; within each, heads are contiguous head_dim
    # chunks (matching keys.view(B, T, H, hd)).  One-time prep outside kernel.
    w_qkv = jnp.concatenate([wq.T, wk.T, wv.T], axis=-1)        # (d_in, 3*d_out)
    b_qkv = jnp.concatenate([bq, bk, bv], axis=-1)[None, :]     # (1, 3*d_out)

    tq = _choose_tile(num_tokens, q_tile)
    tk = _choose_tile(num_tokens, kv_tile)
    nq = num_tokens // tq
    nk = num_tokens // tk

    kernel = functools.partial(
        _flash_mha_kernel, num_heads=num_heads, head_dim=head_dim,
        d_out=d_out, tq=tq, tk=tk, compute_dtype=compute_dtype)

    out = pl.pallas_call(
        kernel,
        out_shape=jax.ShapeDtypeStruct((batch, num_tokens, d_out), x.dtype),
        grid_spec=pltpu.PrefetchScalarGridSpec(
            num_scalar_prefetch=0,
            grid=(batch, nq, nk),
            in_specs=[
                # query rows of x
                pl.BlockSpec((1, tq, d_in), lambda b, qi, ki: (b, qi, 0)),
                # key/value rows of x
                pl.BlockSpec((1, tk, d_in), lambda b, qi, ki: (b, ki, 0)),
                # fused QKV weight, resident in VMEM (constant block index)
                pl.BlockSpec((d_in, 3 * d_out), lambda b, qi, ki: (0, 0)),
                # fused bias
                pl.BlockSpec((1, 3 * d_out), lambda b, qi, ki: (0, 0)),
            ],
            # lane-dense output block: all heads concatenated, no epilogue
            # transpose in the wrapper.
            out_specs=pl.BlockSpec((1, tq, d_out), lambda b, qi, ki: (b, qi, 0)),
            scratch_shapes=[
                pltpu.VMEM((tq, d_out), jnp.float32),                # scaled Q
                pltpu.VMEM((num_heads, tq, head_dim), jnp.float32),  # ctx accum
                pltpu.VMEM((num_heads, tq, 1), jnp.float32),         # running max
                pltpu.VMEM((num_heads, tq, 1), jnp.float32),         # running denom
            ],
        ),
        compiler_params=pltpu.CompilerParams(
            dimension_semantics=("parallel", "parallel", "arbitrary")),
    )(x, x, w_qkv, b_qkv)
    return out


def _reference(x, wq, wk, wv, bq, bk, bv, *, num_heads):
    """Pure-JAX reference matching the PyTorch MultiHeadAttention forward."""
    batch, t, _ = x.shape
    d_out = wq.shape[0]
    head_dim = d_out // num_heads
    hp = jax.lax.Precision.HIGHEST   # keep the reference exact on real TPUs too

    def proj(w, b):
        y = jnp.einsum("btd,od->bto", x, w, precision=hp) + b
        return y.reshape(batch, t, num_heads, head_dim).transpose(0, 2, 1, 3)

    q, k, v = proj(wq, bq), proj(wk, bk), proj(wv, bv)
    scores = jnp.einsum("bhqd,bhkd->bhqk", q, k, precision=hp)
    mask = jnp.triu(jnp.ones((t, t), dtype=bool), k=1)
    scores = jnp.where(mask, -jnp.inf, scores) / jnp.sqrt(jnp.float32(head_dim))
    attn = jax.nn.softmax(scores, axis=-1)
    ctx = jnp.einsum("bhqk,bhkd->bhqd", attn, v, precision=hp)
    return ctx.transpose(0, 2, 1, 3).reshape(batch, t, d_out)


if __name__ == "__main__":
    # Small shapes consistent with the module: (batch, num_tokens, d_in).
    batch, num_tokens, d_in = 2, 8, 32
    d_out, num_heads = 32, 4

    key = jax.random.PRNGKey(0)
    kx, kq, kk, kv_, kbq, kbk, kbv, kx2 = jax.random.split(key, 8)

    x = jax.random.normal(kx, (batch, num_tokens, d_in), dtype=jnp.float32)

    bound = 1.0 / math.sqrt(d_in)   # nn.Linear default init range
    wq = jax.random.uniform(kq, (d_out, d_in), jnp.float32, -bound, bound)
    wk = jax.random.uniform(kk, (d_out, d_in), jnp.float32, -bound, bound)
    wv = jax.random.uniform(kv_, (d_out, d_in), jnp.float32, -bound, bound)
    bq = jax.random.uniform(kbq, (d_out,), jnp.float32, -bound, bound)
    bk = jax.random.uniform(kbk, (d_out,), jnp.float32, -bound, bound)
    bv = jax.random.uniform(kbv, (d_out,), jnp.float32, -bound, bound)

    out = multi_head_attention(x, wq, wk, wv, bq, bk, bv, num_heads=num_heads)
    out = jax.block_until_ready(out)
    ref = _reference(x, wq, wk, wv, bq, bk, bv, num_heads=num_heads)
    assert out.shape == (batch, num_tokens, d_out)
    # 1e-3 comfortably covers MXU f32 multi-pass rounding on hardware while
    # still being orders of magnitude below any logic-error magnitude.
    assert jnp.allclose(out, ref, atol=1e-3, rtol=1e-3), "mismatch vs reference"

    # Second check exercising the multi-tile flash path (2 query tiles x
    # 2 KV tiles, including one skipped fully-masked KV block).
    t2 = 16
    x2 = jax.random.normal(kx2, (batch, t2, d_in), dtype=jnp.float32)
    out2 = multi_head_attention(x2, wq, wk, wv, bq, bk, bv,
                                num_heads=num_heads, q_tile=8, kv_tile=8)
    out2 = jax.block_until_ready(out2)
    ref2 = _reference(x2, wq, wk, wv, bq, bk, bv, num_heads=num_heads)
    assert out2.shape == (batch, t2, d_out)
    assert jnp.allclose(out2, ref2, atol=1e-3, rtol=1e-3), "tiled mismatch"

    print("KERNEL_OK")
</pallas_src>

<mosaic_0001>
module attributes {stable_mosaic.version = 11 : i64} {
  func.func @_flash_mha_kernel(%arg0: i32, %arg1: i32, %arg2: i32, %arg3: memref<1x8x32xf32, #tpu.memory_space<vmem>>, %arg4: memref<1x8x32xf32, #tpu.memory_space<vmem>>, %arg5: memref<32x96xf32, #tpu.memory_space<vmem>>, %arg6: memref<1x96xf32, #tpu.memory_space<vmem>>, %arg7: memref<1x8x32xf32, #tpu.memory_space<vmem>>, %arg8: memref<8x32xf32, #tpu.memory_space<vmem>>, %arg9: memref<4x8x8xf32, #tpu.memory_space<vmem>>, %arg10: memref<4x8x1xf32, #tpu.memory_space<vmem>>, %arg11: memref<4x8x1xf32, #tpu.memory_space<vmem>>) attributes {dimension_semantics = [#tpu.dimension_semantics<parallel>, #tpu.dimension_semantics<parallel>, #tpu.dimension_semantics<arbitrary>], iteration_bounds = array<i64: 2, 1, 1>, scalar_prefetch = 0 : i64, scratch_operands = 4 : i64, tpu.core_type = #tpu.core_type<tc>, window_params = [{transform_indices = @transform_0, window_bounds = array<i64: 1, 8, 32>}, {transform_indices = @transform_1, window_bounds = array<i64: 1, 8, 32>}, {pipeline_mode = #tpu.pipeline_mode<synchronous>, transform_indices = @transform_2, window_bounds = array<i64: 32, 96>}, {pipeline_mode = #tpu.pipeline_mode<synchronous>, transform_indices = @transform_3, window_bounds = array<i64: 1, 96>}, {transform_indices = @transform_4, window_bounds = array<i64: 1, 8, 32>}]} {
    %c8_i32 = arith.constant 8 : i32
    %0 = arith.muli %arg1, %c8_i32 : i32
    %c8_i32_0 = arith.constant 8 : i32
    %1 = arith.muli %arg2, %c8_i32_0 : i32
    %c0_i32 = arith.constant 0 : i32
    %2 = arith.cmpi eq, %arg2, %c0_i32 : i32
    %3 = arith.extui %2 : i1 to i32
    %c0_i32_1 = arith.constant 0 : i32
    %4 = arith.cmpi ne, %3, %c0_i32_1 : i32
    scf.if %4 {
      %c0 = arith.constant 0 : index
      %c0_5 = arith.constant 0 : index
      %c0_6 = arith.constant 0 : index
      %12 = vector.load %arg3[%c0, %c0_5, %c0_6] : memref<1x8x32xf32, #tpu.memory_space<vmem>>, vector<1x8x32xf32>
      %13 = vector.shape_cast %12 : vector<1x8x32xf32> to vector<8x32xf32>
      %c0_7 = arith.constant 0 : index
      %c0_8 = arith.constant 0 : index
      %14 = vector.load %arg5[%c0_7, %c0_8] : memref<32x96xf32, #tpu.memory_space<vmem>>, vector<32x32xf32>
      %cst = arith.constant dense<0.000000e+00> : vector<8x32xf32>
      %15 = tpu.matmul %13, %14, %cst {dimension_numbers = #tpu.dot_dimension_numbers<[1], [0], [0], [1], [0, 0, 1, 1], [], []>} : vector<8x32xf32>, vector<32x32xf32>, vector<8x32xf32> -> vector<8x32xf32>
      %c0_9 = arith.constant 0 : index
      %c0_10 = arith.constant 0 : index
      %16 = vector.load %arg6[%c0_9, %c0_10] : memref<1x96xf32, #tpu.memory_space<vmem>>, vector<1x32xf32>
      %17 = vector.broadcast %16 : vector<1x32xf32> to vector<8x32xf32>
      %18 = arith.addf %15, %17 : vector<8x32xf32>
      %cst_11 = arith.constant 0.353553385 : f32
      %19 = vector.broadcast %cst_11 : f32 to vector<8x32xf32>
      %20 = arith.mulf %18, %19 : vector<8x32xf32>
      %c0_12 = arith.constant 0 : index
      %c0_13 = arith.constant 0 : index
      %21 = vector.load %arg8[%c0_12, %c0_13] : memref<8x32xf32, #tpu.memory_space<vmem>>, vector<8x32xf32>
      tpu.vector_store %arg8[%c0_12, %c0_13], %20 {strides = array<i32>} : memref<8x32xf32, #tpu.memory_space<vmem>>, vector<8x32xf32>,
      %cst_14 = arith.constant 0xFF800000 : f32
      %22 = vector.broadcast %cst_14 : f32 to vector<4x8x1xf32>
      %c0_15 = arith.constant 0 : index
      %c0_16 = arith.constant 0 : index
      %c0_17 = arith.constant 0 : index
      %23 = vector.load %arg10[%c0_15, %c0_16, %c0_17] : memref<4x8x1xf32, #tpu.memory_space<vmem>>, vector<4x8x1xf32>
      tpu.vector_store %arg10[%c0_15, %c0_16, %c0_17], %22 {strides = array<i32>} : memref<4x8x1xf32, #tpu.memory_space<vmem>>, vector<4x8x1xf32>,
      %cst_18 = arith.constant 0.000000e+00 : f32
      %24 = vector.broadcast %cst_18 : f32 to vector<4x8x1xf32>
      %c0_19 = arith.constant 0 : index
      %c0_20 = arith.constant 0 : index
      %c0_21 = arith.constant 0 : index
      %25 = vector.load %arg11[%c0_19, %c0_20, %c0_21] : memref<4x8x1xf32, #tpu.memory_space<vmem>>, vector<4x8x1xf32>
      tpu.vector_store %arg11[%c0_19, %c0_20, %c0_21], %24 {strides = array<i32>} : memref<4x8x1xf32, #tpu.memory_space<vmem>>, vector<4x8x1xf32>,
      %cst_22 = arith.constant 0.000000e+00 : f32
      %26 = vector.broadcast %cst_22 : f32 to vector<4x8x8xf32>
      %c0_23 = arith.constant 0 : index
      %c0_24 = arith.constant 0 : index
      %c0_25 = arith.constant 0 : index
      %27 = vector.load %arg9[%c0_23, %c0_24, %c0_25] : memref<4x8x8xf32, #tpu.memory_space<vmem>>, vector<4x8x8xf32>
      tpu.vector_store %arg9[%c0_23, %c0_24, %c0_25], %26 {strides = array<i32>} : memref<4x8x8xf32, #tpu.memory_space<vmem>>, vector<4x8x8xf32>,
    } else {
    }
    %c7_i32 = arith.constant 7 : i32
    %5 = arith.addi %0, %c7_i32 : i32
    %6 = arith.cmpi sle, %1, %5 : i32
    %7 = arith.extui %6 : i1 to i32
    %c0_i32_2 = arith.constant 0 : i32
    %8 = arith.cmpi ne, %7, %c0_i32_2 : i32
    scf.if %8 {
      %c0 = arith.constant 0 : index
      %c0_5 = arith.constant 0 : index
      %c0_6 = arith.constant 0 : index
      %12 = vector.load %arg4[%c0, %c0_5, %c0_6] : memref<1x8x32xf32, #tpu.memory_space<vmem>>, vector<1x8x32xf32>
      %13 = vector.shape_cast %12 : vector<1x8x32xf32> to vector<8x32xf32>
      %c0_7 = arith.constant 0 : index
      %c32 = arith.constant 32 : index
      %14 = vector.load %arg5[%c0_7, %c32] : memref<32x96xf32, #tpu.memory_space<vmem>>, vector<32x64xf32>
      %cst = arith.constant dense<0.000000e+00> : vector<8x64xf32>
      %15 = tpu.matmul %13, %14, %cst {dimension_numbers = #tpu.dot_dimension_numbers<[1], [0], [0], [1], [0, 0, 1, 1], [], []>} : vector<8x32xf32>, vector<32x64xf32>, vector<8x64xf32> -> vector<8x64xf32>
      %c0_8 = arith.constant 0 : index
      %c32_9 = arith.constant 32 : index
      %16 = vector.load %arg6[%c0_8, %c32_9] : memref<1x96xf32, #tpu.memory_space<vmem>>, vector<1x64xf32>
      %17 = vector.broadcast %16 : vector<1x64xf32> to vector<8x64xf32>
      %18 = arith.addf %15, %17 : vector<8x64xf32>
      %19 = vector.extract_strided_slice %18 {offsets = [0, 0], sizes = [8, 32], strides = [1, 1]} : vector<8x64xf32> to vector<8x32xf32>
      %20 = vector.extract_strided_slice %18 {offsets = [0, 32], sizes = [8, 32], strides = [1, 1]} : vector<8x64xf32> to vector<8x32xf32>
      %21 = tpu.iota {dimensions = array<i32: 0>} : vector<8x8xi32>
      %22 = vector.broadcast %0 : i32 to vector<8x8xi32>
      %23 = arith.addi %22, %21 : vector<8x8xi32>
      %24 = tpu.iota {dimensions = array<i32: 1>} : vector<8x8xi32>
      %25 = vector.broadcast %1 : i32 to vector<8x8xi32>
      %26 = arith.addi %25, %24 : vector<8x8xi32>
      %27 = arith.cmpi sle, %26, %23 : vector<8x8xi32>
      %c0_10 = arith.constant 0 : index
      %c0_11 = arith.constant 0 : index
      %28 = vector.load %arg8[%c0_10, %c0_11] : memref<8x32xf32, #tpu.memory_space<vmem>>, vector<8x8xf32>
      %29 = vector.extract_strided_slice %19 {offsets = [0, 0], sizes = [8, 8], strides = [1, 1]} : vector<8x32xf32> to vector<8x8xf32>
      %30 = vector.extract_strided_slice %20 {offsets = [0, 0], sizes = [8, 8], strides = [1, 1]} : vector<8x32xf32> to vector<8x8xf32>
      %cst_12 = arith.constant dense<0.000000e+00> : vector<8x8xf32>
      %31 = tpu.matmul %28, %29, %cst_12 {dimension_numbers = #tpu.dot_dimension_numbers<[1], [1], [0], [0], [0, 0, 1, 0], [], []>} : vector<8x8xf32>, vector<8x8xf32>, vector<8x8xf32> -> vector<8x8xf32>
      %cst_13 = arith.constant 0xFF800000 : f32
      %32 = vector.broadcast %cst_13 : f32 to vector<8x8xf32>
      %33 = arith.select %27, %31, %32 : vector<8x8xi1>, vector<8x8xf32>
      %c0_14 = arith.constant 0 : index
      %c0_15 = arith.constant 0 : index
      %c0_16 = arith.constant 0 : index
      %34 = vector.load %arg10[%c0_14, %c0_15, %c0_16] : memref<4x8x1xf32, #tpu.memory_space<vmem>>, vector<1x8x1xf32>
      %35 = vector.shape_cast %34 : vector<1x8x1xf32> to vector<8x1xf32>
      %cst_17 = arith.constant dense<0xFF800000> : vector<8xf32>
      %36 = vector.multi_reduction <maximumf>, %33, %cst_17 [1] : vector<8x8xf32> to vector<8xf32>
      %37 = vector.shape_cast %36 : vector<8xf32> to vector<8x1xf32>
      %38 = arith.maximumf %35, %37 : vector<8x1xf32>
      %39 = arith.subf %35, %38 : vector<8x1xf32>
      %40 = math.exp %39 : vector<8x1xf32>
      %41 = vector.broadcast %38 : vector<8x1xf32> to vector<8x8xf32>
      %42 = arith.subf %33, %41 : vector<8x8xf32>
      %43 = math.exp %42 : vector<8x8xf32>
      %c0_18 = arith.constant 0 : index
      %c0_19 = arith.constant 0 : index
      %c0_20 = arith.constant 0 : index
      %44 = vector.load %arg11[%c0_18, %c0_19, %c0_20] : memref<4x8x1xf32, #tpu.memory_space<vmem>>, vector<1x8x1xf32>
      %45 = vector.shape_cast %44 : vector<1x8x1xf32> to vector<8x1xf32>
      %46 = arith.mulf %40, %45 : vector<8x1xf32>
      %cst_21 = arith.constant dense<0.000000e+00> : vector<8xf32>
      %47 = vector.multi_reduction <add>, %43, %cst_21 [1] : vector<8x8xf32> to vector<8xf32>
      %48 = vector.shape_cast %47 : vector<8xf32> to vector<8x1xf32>
      %49 = arith.addf %46, %48 : vector<8x1xf32>
      %c0_22 = arith.constant 0 : index
      %c0_23 = arith.constant 0 : index
      %c0_24 = arith.constant 0 : index
      %50 = vector.load %arg11[%c0_22, %c0_23, %c0_24] : memref<4x8x1xf32, #tpu.memory_space<vmem>>, vector<1x8x1xf32>
      %51 = vector.shape_cast %50 : vector<1x8x1xf32> to vector<8x1xf32>
      %52 = vector.shape_cast %49 : vector<8x1xf32> to vector<1x8x1xf32>
      tpu.vector_store %arg11[%c0_22, %c0_23, %c0_24], %52 {strides = array<i32>} : memref<4x8x1xf32, #tpu.memory_space<vmem>>, vector<1x8x1xf32>,
      %c0_25 = arith.constant 0 : index
      %c0_26 = arith.constant 0 : index
      %c0_27 = arith.constant 0 : index
      %53 = vector.load %arg9[%c0_25, %c0_26, %c0_27] : memref<4x8x8xf32, #tpu.memory_space<vmem>>, vector<1x8x8xf32>
      %54 = vector.shape_cast %53 : vector<1x8x8xf32> to vector<8x8xf32>
      %55 = vector.broadcast %40 : vector<8x1xf32> to vector<8x8xf32>
      %56 = arith.mulf %55, %54 : vector<8x8xf32>
      %cst_28 = arith.constant dense<0.000000e+00> : vector<8x8xf32>
      %57 = tpu.matmul %43, %30, %cst_28 {dimension_numbers = #tpu.dot_dimension_numbers<[1], [0], [0], [1], [0, 0, 1, 1], [], []>} : vector<8x8xf32>, vector<8x8xf32>, vector<8x8xf32> -> vector<8x8xf32>
      %58 = arith.addf %56, %57 : vector<8x8xf32>
      %c0_29 = arith.constant 0 : index
      %c0_30 = arith.constant 0 : index
      %c0_31 = arith.constant 0 : index
      %59 = vector.load %arg9[%c0_29, %c0_30, %c0_31] : memref<4x8x8xf32, #tpu.memory_space<vmem>>, vector<1x8x8xf32>
      %60 = vector.shape_cast %59 : vector<1x8x8xf32> to vector<8x8xf32>
      %61 = vector.shape_cast %58 : vector<8x8xf32> to vector<1x8x8xf32>
      tpu.vector_store %arg9[%c0_29, %c0_30, %c0_31], %61 {strides = array<i32>} : memref<4x8x8xf32, #tpu.memory_space<vmem>>, vector<1x8x8xf32>,
      %c0_32 = arith.constant 0 : index
      %c0_33 = arith.constant 0 : index
      %c0_34 = arith.constant 0 : index
      %62 = vector.load %arg10[%c0_32, %c0_33, %c0_34] : memref<4x8x1xf32, #tpu.memory_space<vmem>>, vector<1x8x1xf32>
      %63 = vector.shape_cast %62 : vector<1x8x1xf32> to vector<8x1xf32>
      %64 = vector.shape_cast %38 : vector<8x1xf32> to vector<1x8x1xf32>
      tpu.vector_store %arg10[%c0_32, %c0_33, %c0_34], %64 {strides = array<i32>} : memref<4x8x1xf32, #tpu.memory_space<vmem>>, vector<1x8x1xf32>,
      %c0_35 = arith.constant 0 : index
      %c8 = arith.constant 8 : index
      %65 = vector.load %arg8[%c0_35, %c8] : memref<8x32xf32, #tpu.memory_space<vmem>>, vector<8x8xf32>
      %66 = vector.extract_strided_slice %19 {offsets = [0, 8], sizes = [8, 8], strides = [1, 1]} : vector<8x32xf32> to vector<8x8xf32>
      %67 = vector.extract_strided_slice %20 {offsets = [0, 8], sizes = [8, 8], strides = [1, 1]} : vector<8x32xf32> to vector<8x8xf32>
      %cst_36 = arith.constant dense<0.000000e+00> : vector<8x8xf32>
      %68 = tpu.matmul %65, %66, %cst_36 {dimension_numbers = #tpu.dot_dimension_numbers<[1], [1], [0], [0], [0, 0, 1, 0], [], []>} : vector<8x8xf32>, vector<8x8xf32>, vector<8x8xf32> -> vector<8x8xf32>
      %cst_37 = arith.constant 0xFF800000 : f32
      %69 = vector.broadcast %cst_37 : f32 to vector<8x8xf32>
      %70 = arith.select %27, %68, %69 : vector<8x8xi1>, vector<8x8xf32>
      %c1 = arith.constant 1 : index
      %c0_38 = arith.constant 0 : index
      %c0_39 = arith.constant 0 : index
      %71 = vector.load %arg10[%c1, %c0_38, %c0_39] : memref<4x8x1xf32, #tpu.memory_space<vmem>>, vector<1x8x1xf32>
      %72 = vector.shape_cast %71 : vector<1x8x1xf32> to vector<8x1xf32>
      %cst_40 = arith.constant dense<0xFF800000> : vector<8xf32>
      %73 = vector.multi_reduction <maximumf>, %70, %cst_40 [1] : vector<8x8xf32> to vector<8xf32>
      %74 = vector.shape_cast %73 : vector<8xf32> to vector<8x1xf32>
      %75 = arith.maximumf %72, %74 : vector<8x1xf32>
      %76 = arith.subf %72, %75 : vector<8x1xf32>
      %77 = math.exp %76 : vector<8x1xf32>
      %78 = vector.broadcast %75 : vector<8x1xf32> to vector<8x8xf32>
      %79 = arith.subf %70, %78 : vector<8x8xf32>
      %80 = math.exp %79 : vector<8x8xf32>
      %c1_41 = arith.constant 1 : index
      %c0_42 = arith.constant 0 : index
      %c0_43 = arith.constant 0 : index
      %81 = vector.load %arg11[%c1_41, %c0_42, %c0_43] : memref<4x8x1xf32, #tpu.memory_space<vmem>>, vector<1x8x1xf32>
      %82 = vector.shape_cast %81 : vector<1x8x1xf32> to vector<8x1xf32>
      %83 = arith.mulf %77, %82 : vector<8x1xf32>
      %cst_44 = arith.constant dense<0.000000e+00> : vector<8xf32>
      %84 = vector.multi_reduction <add>, %80, %cst_44 [1] : vector<8x8xf32> to vector<8xf32>
      %85 = vector.shape_cast %84 : vector<8xf32> to vector<8x1xf32>
      %86 = arith.addf %83, %85 : vector<8x1xf32>
      %c1_45 = arith.constant 1 : index
      %c0_46 = arith.constant 0 : index
      %c0_47 = arith.constant 0 : index
      %87 = vector.load %arg11[%c1_45, %c0_46, %c0_47] : memref<4x8x1xf32, #tpu.memory_space<vmem>>, vector<1x8x1xf32>
      %88 = vector.shape_cast %87 : vector<1x8x1xf32> to vector<8x1xf32>
      %89 = vector.shape_cast %86 : vector<8x1xf32> to vector<1x8x1xf32>
      tpu.vector_store %arg11[%c1_45, %c0_46, %c0_47], %89 {strides = array<i32>} : memref<4x8x1xf32, #tpu.memory_space<vmem>>, vector<1x8x1xf32>,
      %c1_48 = arith.constant 1 : index
      %c0_49 = arith.constant 0 : index
      %c0_50 = arith.constant 0 : index
      %90 = vector.load %arg9[%c1_48, %c0_49, %c0_50] : memref<4x8x8xf32, #tpu.memory_space<vmem>>, vector<1x8x8xf32>
      %91 = vector.shape_cast %90 : vector<1x8x8xf32> to vector<8x8xf32>
      %92 = vector.broadcast %77 : vector<8x1xf32> to vector<8x8xf32>
      %93 = arith.mulf %92, %91 : vector<8x8xf32>
      %cst_51 = arith.constant dense<0.000000e+00> : vector<8x8xf32>
      %94 = tpu.matmul %80, %67, %cst_51 {dimension_numbers = #tpu.dot_dimension_numbers<[1], [0], [0], [1], [0, 0, 1, 1], [], []>} : vector<8x8xf32>, vector<8x8xf32>, vector<8x8xf32> -> vector<8x8xf32>
      %95 = arith.addf %93, %94 : vector<8x8xf32>
      %c1_52 = arith.constant 1 : index
      %c0_53 = arith.constant 0 : index
      %c0_54 = arith.constant 0 : index
      %96 = vector.load %arg9[%c1_52, %c0_53, %c0_54] : memref<4x8x8xf32, #tpu.memory_space<vmem>>, vector<1x8x8xf32>
      %97 = vector.shape_cast %96 : vector<1x8x8xf32> to vector<8x8xf32>
      %98 = vector.shape_cast %95 : vector<8x8xf32> to vector<1x8x8xf32>
      tpu.vector_store %arg9[%c1_52, %c0_53, %c0_54], %98 {strides = array<i32>} : memref<4x8x8xf32, #tpu.memory_space<vmem>>, vector<1x8x8xf32>,
      %c1_55 = arith.constant 1 : index
      %c0_56 = arith.constant 0 : index
      %c0_57 = arith.constant 0 : index
      %99 = vector.load %arg10[%c1_55, %c0_56, %c0_57] : memref<4x8x1xf32, #tpu.memory_space<vmem>>, vector<1x8x1xf32>
      %100 = vector.shape_cast %99 : vector<1x8x1xf32> to vector<8x1xf32>
      %101 = vector.shape_cast %75 : vector<8x1xf32> to vector<1x8x1xf32>
      tpu.vector_store %arg10[%c1_55, %c0_56, %c0_57], %101 {strides = array<i32>} : memref<4x8x1xf32, #tpu.memory_space<vmem>>, vector<1x8x1xf32>,
      %c0_58 = arith.constant 0 : index
      %c16 = arith.constant 16 : index
      %102 = vector.load %arg8[%c0_58, %c16] : memref<8x32xf32, #tpu.memory_space<vmem>>, vector<8x8xf32>
      %103 = vector.extract_strided_slice %19 {offsets = [0, 16], sizes = [8, 8], strides = [1, 1]} : vector<8x32xf32> to vector<8x8xf32>
      %104 = vector.extract_strided_slice %20 {offsets = [0, 16], sizes = [8, 8], strides = [1, 1]} : vector<8x32xf32> to vector<8x8xf32>
      %cst_59 = arith.constant dense<0.000000e+00> : vector<8x8xf32>
      %105 = tpu.matmul %102, %103, %cst_59 {dimension_numbers = #tpu.dot_dimension_numbers<[1], [1], [0], [0], [0, 0, 1, 0], [], []>} : vector<8x8xf32>, vector<8x8xf32>, vector<8x8xf32> -> vector<8x8xf32>
      %cst_60 = arith.constant 0xFF800000 : f32
      %106 = vector.broadcast %cst_60 : f32 to vector<8x8xf32>
      %107 = arith.select %27, %105, %106 : vector<8x8xi1>, vector<8x8xf32>
      %c2 = arith.constant 2 : index
      %c0_61 = arith.constant 0 : index
      %c0_62 = arith.constant 0 : index
      %108 = vector.load %arg10[%c2, %c0_61, %c0_62] : memref<4x8x1xf32, #tpu.memory_space<vmem>>, vector<1x8x1xf32>
      %109 = vector.shape_cast %108 : vector<1x8x1xf32> to vector<8x1xf32>
      %cst_63 = arith.constant dense<0xFF800000> : vector<8xf32>
      %110 = vector.multi_reduction <maximumf>, %107, %cst_63 [1] : vector<8x8xf32> to vector<8xf32>
      %111 = vector.shape_cast %110 : vector<8xf32> to vector<8x1xf32>
      %112 = arith.maximumf %109, %111 : vector<8x1xf32>
      %113 = arith.subf %109, %112 : vector<8x1xf32>
      %114 = math.exp %113 : vector<8x1xf32>
      %115 = vector.broadcast %112 : vector<8x1xf32> to vector<8x8xf32>
      %116 = arith.subf %107, %115 : vector<8x8xf32>
      %117 = math.exp %116 : vector<8x8xf32>
      %c2_64 = arith.constant 2 : index
      %c0_65 = arith.constant 0 : index
      %c0_66 = arith.constant 0 : index
      %118 = vector.load %arg11[%c2_64, %c0_65, %c0_66] : memref<4x8x1xf32, #tpu.memory_space<vmem>>, vector<1x8x1xf32>
      %119 = vector.shape_cast %118 : vector<1x8x1xf32> to vector<8x1xf32>
      %120 = arith.mulf %114, %119 : vector<8x1xf32>
      %cst_67 = arith.constant dense<0.000000e+00> : vector<8xf32>
      %121 = vector.multi_reduction <add>, %117, %cst_67 [1] : vector<8x8xf32> to vector<8xf32>
      %122 = vector.shape_cast %121 : vector<8xf32> to vector<8x1xf32>
      %123 = arith.addf %120, %122 : vector<8x1xf32>
      %c2_68 = arith.constant 2 : index
      %c0_69 = arith.constant 0 : index
      %c0_70 = arith.constant 0 : index
      %124 = vector.load %arg11[%c2_68, %c0_69, %c0_70] : memref<4x8x1xf32, #tpu.memory_space<vmem>>, vector<1x8x1xf32>
      %125 = vector.shape_cast %124 : vector<1x8x1xf32> to vector<8x1xf32>
      %126 = vector.shape_cast %123 : vector<8x1xf32> to vector<1x8x1xf32>
      tpu.vector_store %arg11[%c2_68, %c0_69, %c0_70], %126 {strides = array<i32>} : memref<4x8x1xf32, #tpu.memory_space<vmem>>, vector<1x8x1xf32>,
      %c2_71 = arith.constant 2 : index
      %c0_72 = arith.constant 0 : index
      %c0_73 = arith.constant 0 : index
      %127 = vector.load %arg9[%c2_71, %c0_72, %c0_73] : memref<4x8x8xf32, #tpu.memory_space<vmem>>, vector<1x8x8xf32>
      %128 = vector.shape_cast %127 : vector<1x8x8xf32> to vector<8x8xf32>
      %129 = vector.broadcast %114 : vector<8x1xf32> to vector<8x8xf32>
      %130 = arith.mulf %129, %128 : vector<8x8xf32>
      %cst_74 = arith.constant dense<0.000000e+00> : vector<8x8xf32>
      %131 = tpu.matmul %117, %104, %cst_74 {dimension_numbers = #tpu.dot_dimension_numbers<[1], [0], [0], [1], [0, 0, 1, 1], [], []>} : vector<8x8xf32>, vector<8x8xf32>, vector<8x8xf32> -> vector<8x8xf32>
      %132 = arith.addf %130, %131 : vector<8x8xf32>
      %c2_75 = arith.constant 2 : index
      %c0_76 = arith.constant 0 : index
      %c0_77 = arith.constant 0 : index
      %133 = vector.load %arg9[%c2_75, %c0_76, %c0_77] : memref<4x8x8xf32, #tpu.memory_space<vmem>>, vector<1x8x8xf32>
      %134 = vector.shape_cast %133 : vector<1x8x8xf32> to vector<8x8xf32>
      %135 = vector.shape_cast %132 : vector<8x8xf32> to vector<1x8x8xf32>
      tpu.vector_store %arg9[%c2_75, %c0_76, %c0_77], %135 {strides = array<i32>} : memref<4x8x8xf32, #tpu.memory_space<vmem>>, vector<1x8x8xf32>,
      %c2_78 = arith.constant 2 : index
      %c0_79 = arith.constant 0 : index
      %c0_80 = arith.constant 0 : index
      %136 = vector.load %arg10[%c2_78, %c0_79, %c0_80] : memref<4x8x1xf32, #tpu.memory_space<vmem>>, vector<1x8x1xf32>
      %137 = vector.shape_cast %136 : vector<1x8x1xf32> to vector<8x1xf32>
      %138 = vector.shape_cast %112 : vector<8x1xf32> to vector<1x8x1xf32>
      tpu.vector_store %arg10[%c2_78, %c0_79, %c0_80], %138 {strides = array<i32>} : memref<4x8x1xf32, #tpu.memory_space<vmem>>, vector<1x8x1xf32>,
      %c0_81 = arith.constant 0 : index
      %c24 = arith.constant 24 : index
      %139 = vector.load %arg8[%c0_81, %c24] : memref<8x32xf32, #tpu.memory_space<vmem>>, vector<8x8xf32>
      %140 = vector.extract_strided_slice %19 {offsets = [0, 24], sizes = [8, 8], strides = [1, 1]} : vector<8x32xf32> to vector<8x8xf32>
      %141 = vector.extract_strided_slice %20 {offsets = [0, 24], sizes = [8, 8], strides = [1, 1]} : vector<8x32xf32> to vector<8x8xf32>
      %cst_82 = arith.constant dense<0.000000e+00> : vector<8x8xf32>
      %142 = tpu.matmul %139, %140, %cst_82 {dimension_numbers = #tpu.dot_dimension_numbers<[1], [1], [0], [0], [0, 0, 1, 0], [], []>} : vector<8x8xf32>, vector<8x8xf32>, vector<8x8xf32> -> vector<8x8xf32>
      %cst_83 = arith.constant 0xFF800000 : f32
      %143 = vector.broadcast %cst_83 : f32 to vector<8x8xf32>
      %144 = arith.select %27, %142, %143 : vector<8x8xi1>, vector<8x8xf32>
      %c3 = arith.constant 3 : index
      %c0_84 = arith.constant 0 : index
      %c0_85 = arith.constant 0 : index
      %145 = vector.load %arg10[%c3, %c0_84, %c0_85] : memref<4x8x1xf32, #tpu.memory_space<vmem>>, vector<1x8x1xf32>
      %146 = vector.shape_cast %145 : vector<1x8x1xf32> to vector<8x1xf32>
      %cst_86 = arith.constant dense<0xFF800000> : vector<8xf32>
      %147 = vector.multi_reduction <maximumf>, %144, %cst_86 [1] : vector<8x8xf32> to vector<8xf32>
      %148 = vector.shape_cast %147 : vector<8xf32> to vector<8x1xf32>
      %149 = arith.maximumf %146, %148 : vector<8x1xf32>
      %150 = arith.subf %146, %149 : vector<8x1xf32>
      %151 = math.exp %150 : vector<8x1xf32>
      %152 = vector.broadcast %149 : vector<8x1xf32> to vector<8x8xf32>
      %153 = arith.subf %144, %152 : vector<8x8xf32>
      %154 = math.exp %153 : vector<8x8xf32>
      %c3_87 = arith.constant 3 : index
      %c0_88 = arith.constant 0 : index
      %c0_89 = arith.constant 0 : index
      %155 = vector.load %arg11[%c3_87, %c0_88, %c0_89] : memref<4x8x1xf32, #tpu.memory_space<vmem>>, vector<1x8x1xf32>
      %156 = vector.shape_cast %155 : vector<1x8x1xf32> to vector<8x1xf32>
      %157 = arith.mulf %151, %156 : vector<8x1xf32>
      %cst_90 = arith.constant dense<0.000000e+00> : vector<8xf32>
      %158 = vector.multi_reduction <add>, %154, %cst_90 [1] : vector<8x8xf32> to vector<8xf32>
      %159 = vector.shape_cast %158 : vector<8xf32> to vector<8x1xf32>
      %160 = arith.addf %157, %159 : vector<8x1xf32>
      %c3_91 = arith.constant 3 : index
      %c0_92 = arith.constant 0 : index
      %c0_93 = arith.constant 0 : index
      %161 = vector.load %arg11[%c3_91, %c0_92, %c0_93] : memref<4x8x1xf32, #tpu.memory_space<vmem>>, vector<1x8x1xf32>
      %162 = vector.shape_cast %161 : vector<1x8x1xf32> to vector<8x1xf32>
      %163 = vector.shape_cast %160 : vector<8x1xf32> to vector<1x8x1xf32>
      tpu.vector_store %arg11[%c3_91, %c0_92, %c0_93], %163 {strides = array<i32>} : memref<4x8x1xf32, #tpu.memory_space<vmem>>, vector<1x8x1xf32>,
      %c3_94 = arith.constant 3 : index
      %c0_95 = arith.constant 0 : index
      %c0_96 = arith.constant 0 : index
      %164 = vector.load %arg9[%c3_94, %c0_95, %c0_96] : memref<4x8x8xf32, #tpu.memory_space<vmem>>, vector<1x8x8xf32>
      %165 = vector.shape_cast %164 : vector<1x8x8xf32> to vector<8x8xf32>
      %166 = vector.broadcast %151 : vector<8x1xf32> to vector<8x8xf32>
      %167 = arith.mulf %166, %165 : vector<8x8xf32>
      %cst_97 = arith.constant dense<0.000000e+00> : vector<8x8xf32>
      %168 = tpu.matmul %154, %141, %cst_97 {dimension_numbers = #tpu.dot_dimension_numbers<[1], [0], [0], [1], [0, 0, 1, 1], [], []>} : vector<8x8xf32>, vector<8x8xf32>, vector<8x8xf32> -> vector<8x8xf32>
      %169 = arith.addf %167, %168 : vector<8x8xf32>
      %c3_98 = arith.constant 3 : index
      %c0_99 = arith.constant 0 : index
      %c0_100 = arith.constant 0 : index
      %170 = vector.load %arg9[%c3_98, %c0_99, %c0_100] : memref<4x8x8xf32, #tpu.memory_space<vmem>>, vector<1x8x8xf32>
      %171 = vector.shape_cast %170 : vector<1x8x8xf32> to vector<8x8xf32>
      %172 = vector.shape_cast %169 : vector<8x8xf32> to vector<1x8x8xf32>
      tpu.vector_store %arg9[%c3_98, %c0_99, %c0_100], %172 {strides = array<i32>} : memref<4x8x8xf32, #tpu.memory_space<vmem>>, vector<1x8x8xf32>,
      %c3_101 = arith.constant 3 : index
      %c0_102 = arith.constant 0 : index
      %c0_103 = arith.constant 0 : index
      %173 = vector.load %arg10[%c3_101, %c0_102, %c0_103] : memref<4x8x1xf32, #tpu.memory_space<vmem>>, vector<1x8x1xf32>
      %174 = vector.shape_cast %173 : vector<1x8x1xf32> to vector<8x1xf32>
      %175 = vector.shape_cast %149 : vector<8x1xf32> to vector<1x8x1xf32>
      tpu.vector_store %arg10[%c3_101, %c0_102, %c0_103], %175 {strides = array<i32>} : memref<4x8x1xf32, #tpu.memory_space<vmem>>, vector<1x8x1xf32>,
    } else {
    }
    %c0_i32_3 = arith.constant 0 : i32
    %9 = arith.cmpi eq, %arg2, %c0_i32_3 : i32
    %10 = arith.extui %9 : i1 to i32
    %c0_i32_4 = arith.constant 0 : i32
    %11 = arith.cmpi ne, %10, %c0_i32_4 : i32
    scf.if %11 {
      %c0 = arith.constant 0 : index
      %c0_5 = arith.constant 0 : index
      %c0_6 = arith.constant 0 : index
      %12 = vector.load %arg11[%c0, %c0_5, %c0_6] : memref<4x8x1xf32, #tpu.memory_space<vmem>>, vector<1x8x1xf32>
      %13 = vector.shape_cast %12 : vector<1x8x1xf32> to vector<8x1xf32>
      %cst = arith.constant 1.000000e+00 : f32
      %14 = vector.broadcast %cst : f32 to vector<8x1xf32>
      %15 = arith.divf %14, %13 : vector<8x1xf32>
      %c0_7 = arith.constant 0 : index
      %c0_8 = arith.constant 0 : index
      %c0_9 = arith.constant 0 : index
      %16 = vector.load %arg9[%c0_7, %c0_8, %c0_9] : memref<4x8x8xf32, #tpu.memory_space<vmem>>, vector<1x8x8xf32>
      %17 = vector.shape_cast %16 : vector<1x8x8xf32> to vector<8x8xf32>
      %18 = vector.broadcast %15 : vector<8x1xf32> to vector<8x8xf32>
      %19 = arith.mulf %17, %18 : vector<8x8xf32>
      %c1 = arith.constant 1 : index
      %c0_10 = arith.constant 0 : index
      %c0_11 = arith.constant 0 : index
      %20 = vector.load %arg11[%c1, %c0_10, %c0_11] : memref<4x8x1xf32, #tpu.memory_space<vmem>>, vector<1x8x1xf32>
      %21 = vector.shape_cast %20 : vector<1x8x1xf32> to vector<8x1xf32>
      %cst_12 = arith.constant 1.000000e+00 : f32
      %22 = vector.broadcast %cst_12 : f32 to vector<8x1xf32>
      %23 = arith.divf %22, %21 : vector<8x1xf32>
      %c1_13 = arith.constant 1 : index
      %c0_14 = arith.constant 0 : index
      %c0_15 = arith.constant 0 : index
      %24 = vector.load %arg9[%c1_13, %c0_14, %c0_15] : memref<4x8x8xf32, #tpu.memory_space<vmem>>, vector<1x8x8xf32>
      %25 = vector.shape_cast %24 : vector<1x8x8xf32> to vector<8x8xf32>
      %26 = vector.broadcast %23 : vector<8x1xf32> to vector<8x8xf32>
      %27 = arith.mulf %25, %26 : vector<8x8xf32>
      %c2 = arith.constant 2 : index
      %c0_16 = arith.constant 0 : index
      %c0_17 = arith.constant 0 : index
      %28 = vector.load %arg11[%c2, %c0_16, %c0_17] : memref<4x8x1xf32, #tpu.memory_space<vmem>>, vector<1x8x1xf32>
      %29 = vector.shape_cast %28 : vector<1x8x1xf32> to vector<8x1xf32>
      %cst_18 = arith.constant 1.000000e+00 : f32
      %30 = vector.broadcast %cst_18 : f32 to vector<8x1xf32>
      %31 = arith.divf %30, %29 : vector<8x1xf32>
      %c2_19 = arith.constant 2 : index
      %c0_20 = arith.constant 0 : index
      %c0_21 = arith.constant 0 : index
      %32 = vector.load %arg9[%c2_19, %c0_20, %c0_21] : memref<4x8x8xf32, #tpu.memory_space<vmem>>, vector<1x8x8xf32>
      %33 = vector.shape_cast %32 : vector<1x8x8xf32> to vector<8x8xf32>
      %34 = vector.broadcast %31 : vector<8x1xf32> to vector<8x8xf32>
      %35 = arith.mulf %33, %34 : vector<8x8xf32>
      %c3 = arith.constant 3 : index
      %c0_22 = arith.constant 0 : index
      %c0_23 = arith.constant 0 : index
      %36 = vector.load %arg11[%c3, %c0_22, %c0_23] : memref<4x8x1xf32, #tpu.memory_space<vmem>>, vector<1x8x1xf32>
      %37 = vector.shape_cast %36 : vector<1x8x1xf32> to vector<8x1xf32>
      %cst_24 = arith.constant 1.000000e+00 : f32
      %38 = vector.broadcast %cst_24 : f32 to vector<8x1xf32>
      %39 = arith.divf %38, %37 : vector<8x1xf32>
      %c3_25 = arith.constant 3 : index
      %c0_26 = arith.constant 0 : index
      %c0_27 = arith.constant 0 : index
      %40 = vector.load %arg9[%c3_25, %c0_26, %c0_27] : memref<4x8x8xf32, #tpu.memory_space<vmem>>, vector<1x8x8xf32>
      %41 = vector.shape_cast %40 : vector<1x8x8xf32> to vector<8x8xf32>
      %42 = vector.broadcast %39 : vector<8x1xf32> to vector<8x8xf32>
      %43 = arith.mulf %41, %42 : vector<8x8xf32>
      %44 = tpu.concatenate %19, %27, %35, %43 in 1 : vector<8x8xf32>, vector<8x8xf32>, vector<8x8xf32>, vector<8x8xf32> -> vector<8x32xf32>
      %c0_28 = arith.constant 0 : index
      %c0_29 = arith.constant 0 : index
      %c0_30 = arith.constant 0 : index
      %45 = vector.load %arg7[%c0_28, %c0_29, %c0_30] : memref<1x8x32xf32, #tpu.memory_space<vmem>>, vector<1x8x32xf32>
      %46 = vector.shape_cast %45 : vector<1x8x32xf32> to vector<8x32xf32>
      %47 = vector.shape_cast %44 : vector<8x32xf32> to vector<1x8x32xf32>
      tpu.vector_store %arg7[%c0_28, %c0_29, %c0_30], %47 {strides = array<i32>} : memref<1x8x32xf32, #tpu.memory_space<vmem>>, vector<1x8x32xf32>,
    } else {
    }
    return
  }
  func.func @transform_0(%arg0: i32, %arg1: i32, %arg2: i32) -> (i32, i32, i32) {
    %c0_i32 = arith.constant 0 : i32
    %c0_i32_0 = arith.constant 0 : i32
    return %arg0, %arg1, %c0_i32 : i32, i32, i32
  }
  func.func @transform_1(%arg0: i32, %arg1: i32, %arg2: i32) -> (i32, i32, i32) {
    %c0_i32 = arith.constant 0 : i32
    %c0_i32_0 = arith.constant 0 : i32
    return %arg0, %arg2, %c0_i32 : i32, i32, i32
  }
  func.func @transform_2(%arg0: i32, %arg1: i32, %arg2: i32) -> (i32, i32) {
    %c0_i32 = arith.constant 0 : i32
    %c0_i32_0 = arith.constant 0 : i32
    %c0_i32_1 = arith.constant 0 : i32
    return %c0_i32, %c0_i32_0 : i32, i32
  }
  func.func @transform_3(%arg0: i32, %arg1: i32, %arg2: i32) -> (i32, i32) {
    %c0_i32 = arith.constant 0 : i32
    %c0_i32_0 = arith.constant 0 : i32
    %c0_i32_1 = arith.constant 0 : i32
    return %c0_i32, %c0_i32_0 : i32, i32
  }
  func.func @transform_4(%arg0: i32, %arg1: i32, %arg2: i32) -> (i32, i32, i32) {
    %c0_i32 = arith.constant 0 : i32
    %c0_i32_0 = arith.constant 0 : i32
    return %arg0, %arg1, %c0_i32 : i32, i32, i32
  }
}

</mosaic_0001>

<llo_original>
// kernel: tpu_custom_call.1
$region0: #{tpu_custom_call.1}
  #allocation0 [shape = 'u32[]', space=smem, size = 0x4, offset = 0x4, fixed_abs, tag = 'smem constant byte address 0x4 - core index']
  #allocation1 [shape = 'u32[144,128]{1,0:T(1,128)}', space=vmem, size = 0x12000, scoped, tag = 'internal scratch']
  #allocation2 [shape = 'f32[8,32]{1,0:T(8,128)}', space=vmem, size = 0x1000, scoped, tag = 'scratch operand']
  #allocation3 [shape = 'f32[4,8,8]{2,1,0:T(8,128)}', space=vmem, size = 0x4000, scoped, tag = 'scratch operand']
  #allocation4 [shape = 'f32[4,8,1]{2,1,0:T(8,128)}', space=vmem, size = 0x4000, scoped, tag = 'scratch operand']
  #allocation5 [shape = 'f32[4,8,1]{2,1,0:T(8,128)}', space=vmem, size = 0x4000, scoped, tag = 'scratch operand']
  %s0 = inlined_call_operand.hbm [shape: f32[2,8,32], index: 0, kind: input, shape index: {}]
  %s1 = inlined_call_operand.hbm [shape: f32[2,8,32], index: 1, kind: input, shape index: {}]
  %s2 = inlined_call_operand.hbm [shape: f32[32,96], index: 2, kind: input, shape index: {}]
  %s3 = inlined_call_operand.vmem [shape: f32[1,96], index: 3, kind: input, shape index: {}]
  %s4 = inlined_call_operand.hbm [shape: f32[2,8,32], index: 4, kind: output, shape index: {}]
  %s5 = sld [smem:[#allocation0]]
  $region73: #{tpu_custom_call.1} parent=0
    _
  %s7 = ssub.s32 1, %s5
  %s8 = scalar_select 0, %s7, %s5
  $region1: #{tpu_custom_call.1} parent=0
    #allocation6 [shape = 'u8[8192]{0}', space=vmem, size = 0x2000, scoped, tag = 'input window, operand 0']
    #allocation7 [shape = 's32[2]{0}', space=sflag, size = 0x8, scoped, tag = 'scoped memory for tpu_custom_call.1']
    #allocation8 [shape = 's32[2]{0}', space=sflag, size = 0x8, scoped, tag = 'scoped memory for tpu_custom_call.1']
    #allocation9 [shape = 'u8[8192]{0}', space=vmem, size = 0x2000, scoped, tag = 'input window, operand 1']
    #allocation10 [shape = 's32[2]{0}', space=sflag, size = 0x8, scoped, tag = 'scoped memory for tpu_custom_call.1']
    #allocation11 [shape = 'u8[16384]{0}', space=vmem, size = 0x4000, scoped, tag = 'input window, operand 2, single buffered']
    #allocation12 [shape = 'u8[8192]{0}', space=vmem, size = 0x2000, scoped, tag = 'output window, operand 0']
    %9 = vsyncpa [#allocation7], 0
    %s10 = scalar_lea.sflag [#allocation7], 1
    %11 = vsyncpa %s10, 0
    %12 = vsyncpa [#allocation10], 0
    %s13 = scalar_lea.sflag [#allocation10], 1
    %14 = vsyncpa %s13, 0
    %15 = vsyncpa [#allocation8], 0
    %s16 = scalar_lea.sflag [#allocation8], 1
    %17 = vsyncpa %s16, 0
    loop: start=0, step=1, limit=4
    $region2: #{tpu_custom_call.1} parent=1 // loop_pre_header
      _
    $region3: #{tpu_custom_call.1} parent=1 // loop_header
      %s19 = sphi 0, %s23
      %p20 = scmp.ge.s32.totalorder %s19, 4
      %s26 = sphi 0, %s45
      %s27 = sphi 0, %s41
      %s28 = sphi 0, %s37
      %s29 = sphi 0, %s26
      %s30 = sphi 0, %s27
      %s31 = sphi 0, %s28
      %s32 = sphi 0, %s29
      %s33 = sphi 0, %s30
      %s34 = sphi 0, %s31
      %s50 = sphi 0, %s52
      %s53 = sphi 0, %s50
      %s54 = sphi 0, %s53
      %s70 = sphi 0, %s54
      %s78 = sphi 0, %s80
      %s81 = sphi 0, %s78
      %s82 = sphi 0, %s81
      %s98 = sphi 0, %s82
      %s102 = sphi 0, %s102
      %s104 = sphi 0, %s102
      %s105 = sphi 0, %s104
      %s119 = sphi 0, %s105
      %s123 = sphi 0, %s123
      %s125 = sphi 0, %s123
      %s126 = sphi 0, %s125
      %s140 = sphi 0, %s126
      %s148 = sphi 0, %s150
      %s151 = sphi 0, %s148
      %s152 = sphi 0, %s151
      %s168 = sphi 0, %s152
    $region4: #{tpu_custom_call.1} parent=1 // loop_header_branch
      %22 = sbr.rel (%p20) target = $region8
    $region5: #{tpu_custom_call.1} parent=1 // loop_body
      %s24 = ssub.s32 %s19, 1
      %s25 = ssub.s32 %s19, 2
      %s35 = sadd.s32 1, %s28
      %p36 = scmp.ge.s32.totalorder %s35, 1
      %s37 = scalar_select %p36, 0, %s35
      %s38 = sadd.s32 1, %s27
      %s39 = scalar_select %p36, %s38, %s27
      %p40 = scmp.ge.s32.totalorder %s39, 1
      %s41 = scalar_select %p40, 0, %s39
      %s42 = sadd.s32 1, %s26
      %s43 = scalar_select %p40, %s42, %s26
      %p44 = scmp.ge.s32.totalorder %s43, 2
      %s45 = scalar_select %p44, 0, %s43
      %s46 = ssub.s32 %s26, %s45
      %s47 = ssub.s32 %s27, %s41
      %s48 = sor.u32 %s46, %s47
      %p49 = scmp.eq.s32.totalorder %s48, 0
      %s51 = sadd.s32 %s50, 1
      %s52 = scalar_select %p49, %s50, %s51
      %p55 = pneg %p49
      %p56 = scmp.eq.s32.totalorder %s19, 1
      %p57 = por %p55, %p56
      %p58 = scmp.ne.s32.totalorder %s50, %s53
      %p59 = scmp.eq.s32.totalorder %s19, 0
      %p60 = por %p58, %p59
      %p61 = scmp.ne.s32.totalorder %s50, %s53
      %p62 = scmp.eq.s32.totalorder %s24, 1
      %p63 = por %p61, %p62
      %p64 = scmp.ne.s32.totalorder %s53, %s54
      %p65 = scmp.eq.s32.totalorder %s24, 0
      %p66 = por %p64, %p65
      %p67 = scmp.ne.s32.totalorder %s53, %s54
      %p68 = scmp.eq.s32.totalorder %s25, 1
      %p69 = por %p67, %p68
      %p71 = scmp.ne.s32.totalorder %s54, %s70
      %p72 = scmp.eq.s32.totalorder %s25, 0
      %p73 = por %p71, %p72
      %s74 = ssub.s32 %s26, %s45
      %s75 = ssub.s32 %s28, %s37
      %s76 = sor.u32 %s74, %s75
      %p77 = scmp.eq.s32.totalorder %s76, 0
      %s79 = sadd.s32 %s78, 1
      %s80 = scalar_select %p77, %s78, %s79
      %p83 = pneg %p77
      %p84 = scmp.eq.s32.totalorder %s19, 1
      %p85 = por %p83, %p84
      %p86 = scmp.ne.s32.totalorder %s78, %s81
      %p87 = scmp.eq.s32.totalorder %s19, 0
      %p88 = por %p86, %p87
      %p89 = scmp.ne.s32.totalorder %s78, %s81
      %p90 = scmp.eq.s32.totalorder %s24, 1
      %p91 = por %p89, %p90
      %p92 = scmp.ne.s32.totalorder %s81, %s82
      %p93 = scmp.eq.s32.totalorder %s24, 0
      %p94 = por %p92, %p93
      %p95 = scmp.ne.s32.totalorder %s81, %s82
      %p96 = scmp.eq.s32.totalorder %s25, 1
      %p97 = por %p95, %p96
      %p99 = scmp.ne.s32.totalorder %s82, %s98
      %p100 = scmp.eq.s32.totalorder %s25, 0
      %p101 = por %p99, %p100
      %s103 = sadd.s32 %s102, 1
      %p106 = scmp.eq.s32.totalorder %s19, 1
      %p107 = scmp.ne.s32.totalorder %s102, %s104
      %p108 = scmp.eq.s32.totalorder %s19, 0
      %p109 = por %p107, %p108
      %p110 = scmp.ne.s32.totalorder %s102, %s104
      %p111 = scmp.eq.s32.totalorder %s24, 1
      %p112 = por %p110, %p111
      %p113 = scmp.ne.s32.totalorder %s104, %s105
      %p114 = scmp.eq.s32.totalorder %s24, 0
      %p115 = por %p113, %p114
      %p116 = scmp.ne.s32.totalorder %s104, %s105
      %p117 = scmp.eq.s32.totalorder %s25, 1
      %p118 = por %p116, %p117
      %p120 = scmp.ne.s32.totalorder %s105, %s119
      %p121 = scmp.eq.s32.totalorder %s25, 0
      %p122 = por %p120, %p121
      %s124 = sadd.s32 %s123, 1
      %p127 = scmp.eq.s32.totalorder %s19, 1
      %p128 = scmp.ne.s32.totalorder %s123, %s125
      %p129 = scmp.eq.s32.totalorder %s19, 0
      %p130 = por %p128, %p129
      %p131 = scmp.ne.s32.totalorder %s123, %s125
      %p132 = scmp.eq.s32.totalorder %s24, 1
      %p133 = por %p131, %p132
      %p134 = scmp.ne.s32.totalorder %s125, %s126
      %p135 = scmp.eq.s32.totalorder %s24, 0
      %p136 = por %p134, %p135
      %p137 = scmp.ne.s32.totalorder %s125, %s126
      %p138 = scmp.eq.s32.totalorder %s25, 1
      %p139 = por %p137, %p138
      %p141 = scmp.ne.s32.totalorder %s126, %s140
      %p142 = scmp.eq.s32.totalorder %s25, 0
      %p143 = por %p141, %p142
      %s144 = ssub.s32 %s26, %s45
      %s145 = ssub.s32 %s27, %s41
      %s146 = sor.u32 %s144, %s145
      %p147 = scmp.eq.s32.totalorder %s146, 0
      %s149 = sadd.s32 %s148, 1
      %s150 = scalar_select %p147, %s148, %s149
      %p153 = pneg %p147
      %p154 = scmp.eq.s32.totalorder %s19, 1
      %p155 = por %p153, %p154
      %p156 = scmp.ne.s32.totalorder %s148, %s151
      %p157 = scmp.eq.s32.totalorder %s19, 0
      %p158 = por %p156, %p157
      %p159 = scmp.ne.s32.totalorder %s148, %s151
      %p160 = scmp.eq.s32.totalorder %s24, 1
      %p161 = por %p159, %p160
      %p162 = scmp.ne.s32.totalorder %s151, %s152
      %p163 = scmp.eq.s32.totalorder %s24, 0
      %p164 = por %p162, %p163
      %p165 = scmp.ne.s32.totalorder %s151, %s152
      %p166 = scmp.eq.s32.totalorder %s25, 1
      %p167 = por %p165, %p166
      %p169 = scmp.ne.s32.totalorder %s152, %s168
      %p170 = scmp.eq.s32.totalorder %s25, 0
      %p171 = por %p169, %p170
      %p172 = scmp.le.s32.totalorder 1, %s19
      %p173 = scmp.lt.s32.totalorder %s19, 3
      %p174 = pnand %p172, %p173
      %p175 = pneg %p174
      // Predicated region
      $region9: #{tpu_custom_call.1} parent=5 // pred_check
        _
      $region10: #{tpu_custom_call.1} parent=5 // pred_check_branch
        %177 = sbr.rel (%p174) target = $region12
      $region11: #{tpu_custom_call.1} parent=5 // pred_region
        %s178 = ssub.s32 %s19, 1
        // Predicated region
        $region13: #{tpu_custom_call.1} parent=11 // pred_check
          %p179 = pneg %p115
        $region14: #{tpu_custom_call.1} parent=11 // pred_check_branch
          %181 = sbr.rel (%p179) target = $region16
        $region15: #{tpu_custom_call.1} parent=11 // pred_region
          %s183 = ssub.s32 512, 512
          %184 = vsyncadd [#allocation10], %s183
          %s185 = sshll.u32 [#allocation11], 4
          %s186 = int_to_ptr.vmem [resolvable:$true] %s185
          %191 = dma.hbm_to_vmem [thread:$0]  %s2, 512, %s186, [#allocation10], 128, 128, 8
        $region16: #{tpu_custom_call.1} parent=11 // pred_fallthru
          _
        // Predicated region
        $region17: #{tpu_custom_call.1} parent=11 // pred_check
          %p192 = pneg %p136
        $region18: #{tpu_custom_call.1} parent=11 // pred_check_branch
          %194 = sbr.rel (%p192) target = $region20
        $region19: #{tpu_custom_call.1} parent=11 // pred_region
          _
        $region20: #{tpu_custom_call.1} parent=11 // pred_fallthru
          _
      $region12: #{tpu_custom_call.1} parent=5 // pred_fallthru
        _
      %p195 = scmp.lt.s32.totalorder %s19, 2
      // Predicated region
      $region21: #{tpu_custom_call.1} parent=5 // pred_check
        %p196 = pneg %p195
      $region22: #{tpu_custom_call.1} parent=5 // pred_check_branch
        %198 = sbr.rel (%p196) target = $region24
      $region23: #{tpu_custom_call.1} parent=5 // pred_region
        // Predicated region
        $region25: #{tpu_custom_call.1} parent=23 // pred_check
          %p199 = pneg %p60
        $region26: #{tpu_custom_call.1} parent=23 // pred_check_branch
          %201 = sbr.rel (%p199) target = $region28
        $region27: #{tpu_custom_call.1} parent=23 // pred_region
          %s202 = sand.u32 %s50, 1
          %s203 = scalar_lea.sflag [#allocation7], %s202
          %s204 = sand.u32 %s50, 1
          %s205 = smul.addr %s204, 8
          %s206 = scalar_lea.vmem [#allocation6], %s205
          %s208 = ssub.s32 128, 128
          %209 = vsyncadd %s203, %s208
          %s210 = sadd.s32 %s27, %s26
          %s211 = smul.addr %s210, 128
          %s212 = scalar_lea.hbm %s0, %s211
          %s214 = sshll.u32 %s206, 4
          %s215 = int_to_ptr.vmem [resolvable:$true] %s214
          %217 = dma.hbm_to_vmem [thread:$0]  %s212, 128, %s215, %s203
        $region28: #{tpu_custom_call.1} parent=23 // pred_fallthru
          _
        // Predicated region
        $region29: #{tpu_custom_call.1} parent=23 // pred_check
          %p218 = pneg %p88
        $region30: #{tpu_custom_call.1} parent=23 // pred_check_branch
          %220 = sbr.rel (%p218) target = $region32
        $region31: #{tpu_custom_call.1} parent=23 // pred_region
          %s221 = sand.u32 %s19, 1
          %s222 = scalar_lea.sflag [#allocation10], %s221
          %s223 = sand.u32 %s78, 1
          %s224 = smul.addr %s223, 8
          %s225 = scalar_lea.vmem [#allocation9], %s224
          %s227 = ssub.s32 128, 128
          %228 = vsyncadd %s222, %s227
          %s229 = sadd.s32 %s28, %s26
          %s230 = smul.addr %s229, 128
          %s231 = scalar_lea.hbm %s1, %s230
          %s233 = sshll.u32 %s225, 4
          %s234 = int_to_ptr.vmem [resolvable:$true] %s233
          %236 = dma.hbm_to_vmem [thread:$0]  %s231, 128, %s234, %s222
        $region32: #{tpu_custom_call.1} parent=23 // pred_fallthru
          _
      $region24: #{tpu_custom_call.1} parent=5 // pred_fallthru
        _
      %p237 = scmp.le.s32.totalorder 1, %s19
      %p238 = scmp.lt.s32.totalorder %s19, 3
      %p239 = pnand %p237, %p238
      %p240 = pneg %p239
      // Predicated region
      $region33: #{tpu_custom_call.1} parent=5 // pred_check
        _
      $region34: #{tpu_custom_call.1} parent=5 // pred_check_branch
        %242 = sbr.rel (%p239) target = $region36
      $region35: #{tpu_custom_call.1} parent=5 // pred_region
        %s243 = ssub.s32 %s19, 1
        %s244 = sand.u32 %s53, 1
        %s245 = scalar_lea.sflag [#allocation7], %s244
        %s246 = sand.u32 %s53, 1
        %s247 = smul.addr %s246, 8
        %s248 = scalar_lea.vmem [#allocation6], %s247
        // Predicated region
        $region37: #{tpu_custom_call.1} parent=35 // pred_check
          %p249 = pneg %p66
        $region38: #{tpu_custom_call.1} parent=35 // pred_check_branch
          %251 = sbr.rel (%p249) target = $region40
        $region39: #{tpu_custom_call.1} parent=35 // pred_region
          %252 = dma.done %s245, 128
        $region40: #{tpu_custom_call.1} parent=35 // pred_fallthru
          _
        %s253 = sand.u32 %s24, 1
        %s254 = scalar_lea.sflag [#allocation10], %s253
        %s255 = sand.u32 %s81, 1
        %s256 = smul.addr %s255, 8
        %s257 = scalar_lea.vmem [#allocation9], %s256
        // Predicated region
        $region41: #{tpu_custom_call.1} parent=35 // pred_check
          %p258 = pneg %p94
        $region42: #{tpu_custom_call.1} parent=35 // pred_check_branch
          %260 = sbr.rel (%p258) target = $region44
        $region43: #{tpu_custom_call.1} parent=35 // pred_region
          %261 = dma.done %s254, 128
        $region44: #{tpu_custom_call.1} parent=35 // pred_fallthru
          _
        // Predicated region
        $region45: #{tpu_custom_call.1} parent=35 // pred_check
          %p262 = pneg %p115
        $region46: #{tpu_custom_call.1} parent=35 // pred_check_branch
          %264 = sbr.rel (%p262) target = $region48
        $region47: #{tpu_custom_call.1} parent=35 // pred_region
          %265 = dma.done [#allocation10], 512
        $region48: #{tpu_custom_call.1} parent=35 // pred_fallthru
          _
        %s266 = sand.u32 %s53, 1
        %s267 = scalar_lea.sflag [#allocation7], %s266
        %s268 = sand.u32 %s53, 1
        %s269 = smul.addr %s268, 8
        %s270 = scalar_lea.vmem [#allocation6], %s269
        %p271 = pneg %p66
        %p272 = pneg %p63
        %s273 = sand.u32 %s24, 1
        %s274 = scalar_lea.sflag [#allocation10], %s273
        %s275 = sand.u32 %s81, 1
        %s276 = smul.addr %s275, 8
        %s277 = scalar_lea.vmem [#allocation9], %s276
        %p278 = pneg %p94
        %p279 = pneg %p91
        %p280 = pneg %p115
        %p281 = pneg %p112
        %p282 = pneg %p136
        %p283 = pneg %p133
        %p284 = pneg %p164
        %p285 = pneg %p161
        %s286 = sand.u32 %s151, 1
        %s287 = scalar_lea.sflag [#allocation8], %s286
        %s288 = sand.u32 %s151, 1
        %s289 = smul.addr %s288, 8
        %s290 = scalar_lea.vmem [#allocation12], %s289
        %s291 = smul.u32 %s30, 8
        %s292 = smul.u32 %s31, 8
        %p293 = scmp.eq.s32.totalorder %s31, 0
        // Predicated region
        $region49: #{tpu_custom_call.1} parent=35 // pred_check
          %p294 = pneg %p293
        $region50: #{tpu_custom_call.1} parent=35 // pred_check_branch
          %296 = sbr.rel (%p294) target = $region52
        $region51: #{tpu_custom_call.1} parent=35 // pred_region
          %v297 = vld [vmem:[%s248] sm:$0xff]
          %v298 = vld [vmem:[#allocation11] sm:$0xff]
          %v299 = vld [vmem:[#allocation11 + $0x8] sm:$0xff]
          %v300 = vld [vmem:[#allocation11 + $0x10] sm:$0xff]
          %v301 = vld [vmem:[#allocation11 + $0x18] sm:$0xff]
          %v302 = vld [vmem:[%s3] sm:$0x1]
          %v304 = vlaneseq
          %v305 = vshrl.u32 %v304, 7
          %v306 = vsub.s32 0, %v305
          %v307 = vrot.slane %v302, %v306
          %vm309 = vcmask 261120
          %v311 = vsel %vm309, %v297, 0
          %313 = vmatprep.subr.mxu0 0.0
          %314 = vmatpush1.msra.mxu0 %v298
          %315 = vmatprep.subr.mxu0 0.0
          %316 = vmatpush1.msra.mxu0 %v299
          %317 = vmatprep.subr.mxu0 0.0
          %318 = vmatpush1.msra.mxu0 %v300
          %319 = vmatprep.subr.mxu0 0.0
          %320 = vmatpush1.msra.mxu0 %v301
          %321 = vmatprep.subr.mxu0 0.0
          %322 = vmatpush1.msra.mxu0 0.0
          %323 = vmatprep.subr.mxu0 0.0
          %324 = vmatpush1.msra.mxu0 0.0
          %325 = vmatprep.subr.mxu0 0.0
          %326 = vmatpush1.msra.mxu0 0.0
          %327 = vmatprep.subr.mxu0 0.0
          %328 = vmatpush1.msra.mxu0 0.0
          %329 = vmatprep.subr.mxu0 0.0
          %330 = vmatpush1.msra.mxu0 0.0
          %331 = vmatprep.subr.mxu0 0.0
          %332 = vmatpush1.msra.mxu0 0.0
          %333 = vmatprep.subr.mxu0 0.0
          %334 = vmatpush1.msra.mxu0 0.0
          %335 = vmatprep.subr.mxu0 0.0
          %336 = vmatpush1.msra.mxu0 0.0
          %337 = vmatprep.subr.mxu0 0.0
          %338 = vmatpush1.msra.mxu0 0.0
          %339 = vmatprep.subr.mxu0 0.0
          %340 = vmatpush1.msra.mxu0 0.0
          %341 = vmatprep.subr.mxu0 0.0
          %342 = vmatpush1.msra.mxu0 0.0
          %343 = vmatprep.subr.mxu0 0.0
          %344 = vmatpush1.msra.mxu0 0.0
          %345 = vmatprep.subr.mxu0 0.0
          %346 = vmatpush1.msra.mxu0 0.0
          %347 = vmatprep.subr.mxu0 0.0
          %348 = vmatpush1.msra.mxu0 0.0
          %349 = vmatprep.subr.mxu0 0.0
          %350 = vmatpush1.msra.mxu0 0.0
          %351 = vmatprep.subr.mxu0 0.0
          %352 = vmatpush1.msra.mxu0 0.0
          %353 = vmatprep.subr.mxu0 0.0
          %354 = vmatpush1.msra.mxu0 0.0
          %355 = vmatprep.subr.mxu0 0.0
          %356 = vmatpush1.msra.mxu0 0.0
          %357 = vmatprep.subr.mxu0 0.0
          %358 = vmatpush1.msra.mxu0 0.0
          %359 = vmatprep.subr.mxu0 0.0
          %360 = vmatpush1.msra.mxu0 0.0
          %361 = vmatprep.subr.mxu0 0.0
          %362 = vmatpush1.msra.mxu0 0.0
          %363 = vmatprep.subr.mxu0 0.0
          %364 = vmatpush1.msra.mxu0 0.0
          %365 = vmatprep.subr.mxu0 0.0
          %366 = vmatpush1.msra.mxu0 0.0
          %367 = vmatprep.subr.mxu0 0.0
          %368 = vmatpush1.msra.mxu0 0.0
          %369 = vmatprep.subr.mxu0 0.0
          %370 = vmatpush1.msra.mxu0 0.0
          %371 = vmatprep.subr.mxu0 0.0
          %372 = vmatpush1.msra.mxu0 0.0
          %373 = vmatprep.subr.mxu0 0.0
          %374 = vmatpush1.msra.mxu0 0.0
          %375 = vmatprep.subr.mxu0 0.0
          %376 = vmatpush1.msra.mxu0 0.0
          %377 = vmatprep.mubr.f32.mxu0 0.0
          %378 = vmatmul.mubr.f32.gmra.mrb[0].mxu0 %v311
          %v379 = vpop.f32.mrb[0].mxu0
          %v380 = vadd.f32 %v307, %v379
          %v381 = vpop.f32.mrb[0].mxu0
          %382 = vdwg.mxu0
          %v383 = vmul.f32 %v380, 0.35355338
          %384 = vst.msk [vmem:[#allocation2] sm:$0xff] %vm309, %v383
          %vm385 = vcmask 7168
          %386 = vst.msk [vmem:[#allocation4] sm:$0xff] %vm385, -inf
          %387 = vst.msk [vmem:[#allocation4 + $0x8] sm:$0xff] %vm385, -inf
          %388 = vst.msk [vmem:[#allocation4 + $0x10] sm:$0xff] %vm385, -inf
          %389 = vst.msk [vmem:[#allocation4 + $0x18] sm:$0xff] %vm385, -inf
          %390 = vst.msk [vmem:[#allocation5] sm:$0xff] %vm385, 0.0
          %391 = vst.msk [vmem:[#allocation5 + $0x8] sm:$0xff] %vm385, 0.0
          %392 = vst.msk [vmem:[#allocation5 + $0x10] sm:$0xff] %vm385, 0.0
          %393 = vst.msk [vmem:[#allocation5 + $0x18] sm:$0xff] %vm385, 0.0
          %vm394 = vcmask 64512
          %395 = vst.msk [vmem:[#allocation3] sm:$0xff] %vm394, 0.0
          %396 = vst.msk [vmem:[#allocation3 + $0x8] sm:$0xff] %vm394, 0.0
          %397 = vst.msk [vmem:[#allocation3 + $0x10] sm:$0xff] %vm394, 0.0
          %398 = vst.msk [vmem:[#allocation3 + $0x18] sm:$0xff] %vm394, 0.0
        $region52: #{tpu_custom_call.1} parent=35 // pred_fallthru
          _
        %s399 = sadd.s32 %s291, 7
        %p400 = scmp.le.s32.totalorder %s292, %s399
        // Predicated region
        $region53: #{tpu_custom_call.1} parent=35 // pred_check
          %p401 = pneg %p400
        $region54: #{tpu_custom_call.1} parent=35 // pred_check_branch
          %403 = sbr.rel (%p401) target = $region56
        $region55: #{tpu_custom_call.1} parent=35 // pred_region
          %v404 = vld [vmem:[%s257] sm:$0xff]
          %v405 = vld [vmem:[#allocation11] sm:$0xff]
          %v406 = vld [vmem:[#allocation11 + $0x8] sm:$0xff]
          %v407 = vld [vmem:[#allocation11 + $0x10] sm:$0xff]
          %v408 = vld [vmem:[#allocation11 + $0x18] sm:$0xff]
          %v409 = vld [vmem:[%s3] sm:$0x1]
          %v411 = vlaneseq
          %v412 = vshrl.u32 %v411, 7
          %v413 = vsub.s32 0, %v412
          %v414 = vrot.slane %v409, %v413
          %419 = vrot.lane.b32.xlu0 %v405, 96
          %v420 = vpop.permute.xlu0 %419
          %421 = vrot.lane.b32.xlu0 %v406, 96
          %v422 = vpop.permute.xlu0 %421
          %423 = vrot.lane.b32.xlu0 %v407, 96
          %v424 = vpop.permute.xlu0 %423
          %425 = vrot.lane.b32.xlu0 %v408, 96
          %v426 = vpop.permute.xlu0 %425
          %431 = vrot.lane.b32.xlu0 %v414, 96
          %v432 = vpop.permute.xlu0 %431
          %vm434 = vcmask 261120
          %v436 = vsel %vm434, %v404, 0
          %438 = vmatprep.subr.mxu0 0.0
          %439 = vmatpush1.msra.mxu0 %v420
          %440 = vmatprep.subr.mxu0 0.0
          %441 = vmatpush1.msra.mxu0 %v422
          %442 = vmatprep.subr.mxu0 0.0
          %443 = vmatpush1.msra.mxu0 %v424
          %444 = vmatprep.subr.mxu0 0.0
          %445 = vmatpush1.msra.mxu0 %v426
          %446 = vmatprep.subr.mxu0 0.0
          %447 = vmatpush1.msra.mxu0 0.0
          %448 = vmatprep.subr.mxu0 0.0
          %449 = vmatpush1.msra.mxu0 0.0
          %450 = vmatprep.subr.mxu0 0.0
          %451 = vmatpush1.msra.mxu0 0.0
          %452 = vmatprep.subr.mxu0 0.0
          %453 = vmatpush1.msra.mxu0 0.0
          %454 = vmatprep.subr.mxu0 0.0
          %455 = vmatpush1.msra.mxu0 0.0
          %456 = vmatprep.subr.mxu0 0.0
          %457 = vmatpush1.msra.mxu0 0.0
          %458 = vmatprep.subr.mxu0 0.0
          %459 = vmatpush1.msra.mxu0 0.0
          %460 = vmatprep.subr.mxu0 0.0
          %461 = vmatpush1.msra.mxu0 0.0
          %462 = vmatprep.subr.mxu0 0.0
          %463 = vmatpush1.msra.mxu0 0.0
          %464 = vmatprep.subr.mxu0 0.0
          %465 = vmatpush1.msra.mxu0 0.0
          %466 = vmatprep.subr.mxu0 0.0
          %467 = vmatpush1.msra.mxu0 0.0
          %468 = vmatprep.subr.mxu0 0.0
          %469 = vmatpush1.msra.mxu0 0.0
          %470 = vmatprep.subr.mxu0 0.0
          %471 = vmatpush1.msra.mxu0 0.0
          %472 = vmatprep.subr.mxu0 0.0
          %473 = vmatpush1.msra.mxu0 0.0
          %474 = vmatprep.subr.mxu0 0.0
          %475 = vmatpush1.msra.mxu0 0.0
          %476 = vmatprep.subr.mxu0 0.0
          %477 = vmatpush1.msra.mxu0 0.0
          %478 = vmatprep.subr.mxu0 0.0
          %479 = vmatpush1.msra.mxu0 0.0
          %480 = vmatprep.subr.mxu0 0.0
          %481 = vmatpush1.msra.mxu0 0.0
          %482 = vmatprep.subr.mxu0 0.0
          %483 = vmatpush1.msra.mxu0 0.0
          %484 = vmatprep.subr.mxu0 0.0
          %485 = vmatpush1.msra.mxu0 0.0
          %486 = vmatprep.subr.mxu0 0.0
          %487 = vmatpush1.msra.mxu0 0.0
          %488 = vmatprep.subr.mxu0 0.0
          %489 = vmatpush1.msra.mxu0 0.0
          %490 = vmatprep.subr.mxu0 0.0
          %491 = vmatpush1.msra.mxu0 0.0
          %492 = vmatprep.subr.mxu0 0.0
          %493 = vmatpush1.msra.mxu0 0.0
          %494 = vmatprep.subr.mxu0 0.0
          %495 = vmatpush1.msra.mxu0 0.0
          %496 = vmatprep.subr.mxu0 0.0
          %497 = vmatpush1.msra.mxu0 0.0
          %498 = vmatprep.subr.mxu0 0.0
          %499 = vmatpush1.msra.mxu0 0.0
          %500 = vmatprep.subr.mxu0 0.0
          %501 = vmatpush1.msra.mxu0 0.0
          %502 = vmatprep.mubr.f32.mxu0 0.0
          %503 = vmatmul.mubr.f32.gmra.mrb[0].mxu0 %v436
          %v504 = vpop.f32.mrb[0].mxu0
          %v505 = vadd.f32 %v432, %v504
          %v506 = vpop.f32.mrb[0].mxu0
          %507 = vdwg.mxu0
          %v508 = vlaneseq
          %v509 = vshrl.u32 %v508, 7
          %v510 = vstv %s291
          %v511 = vadd.s32 %v510, %v509
          %v512 = vlaneseq
          %v513 = vand.u32 %v512, 127
          %v514 = vstv %s292
          %v515 = vadd.s32 %v514, %v513
          %vm516 = vcmp.le.s32.totalorder %v515, %v511
          %v517 = vld [vmem:[#allocation2] sm:$0xff]
          %vm518 = vcmask 64512
          %v520 = vsel %vm518, %v517, 0
          %v523 = vsel %vm518, %v505, 0
          %525 = vmatprep.subr.mxu0 0.0
          %526 = vmatpush1.xpose.msra.mxu0 %v523
          %527 = vmatprep.subr.mxu0 0.0
          %528 = vmatpush1.xpose.msra.mxu0 0.0
          %529 = vmatprep.subr.mxu0 0.0
          %530 = vmatpush1.xpose.msra.mxu0 0.0
          %531 = vmatprep.subr.mxu0 0.0
          %532 = vmatpush1.xpose.msra.mxu0 0.0
          %533 = vmatprep.subr.mxu0 0.0
          %534 = vmatpush1.xpose.msra.mxu0 0.0
          %535 = vmatprep.subr.mxu0 0.0
          %536 = vmatpush1.xpose.msra.mxu0 0.0
          %537 = vmatprep.subr.mxu0 0.0
          %538 = vmatpush1.xpose.msra.mxu0 0.0
          %539 = vmatprep.subr.mxu0 0.0
          %540 = vmatpush1.xpose.msra.mxu0 0.0
          %541 = vmatprep.subr.mxu0 0.0
          %542 = vmatpush1.xpose.msra.mxu0 0.0
          %543 = vmatprep.subr.mxu0 0.0
          %544 = vmatpush1.xpose.msra.mxu0 0.0
          %545 = vmatprep.subr.mxu0 0.0
          %546 = vmatpush1.xpose.msra.mxu0 0.0
          %547 = vmatprep.subr.mxu0 0.0
          %548 = vmatpush1.xpose.msra.mxu0 0.0
          %549 = vmatprep.subr.mxu0 0.0
          %550 = vmatpush1.xpose.msra.mxu0 0.0
          %551 = vmatprep.subr.mxu0 0.0
          %552 = vmatpush1.xpose.msra.mxu0 0.0
          %553 = vmatprep.subr.mxu0 0.0
          %554 = vmatpush1.xpose.msra.mxu0 0.0
          %555 = vmatprep.subr.mxu0 0.0
          %556 = vmatpush1.xpose.msra.mxu0 0.0
          %557 = vmatprep.subr.mxu0 0.0
          %558 = vmatpush1.xpose.msra.mxu0 0.0
          %559 = vmatprep.subr.mxu0 0.0
          %560 = vmatpush1.xpose.msra.mxu0 0.0
          %561 = vmatprep.subr.mxu0 0.0
          %562 = vmatpush1.xpose.msra.mxu0 0.0
          %563 = vmatprep.subr.mxu0 0.0
          %564 = vmatpush1.xpose.msra.mxu0 0.0
          %565 = vmatprep.subr.mxu0 0.0
          %566 = vmatpush1.xpose.msra.mxu0 0.0
          %567 = vmatprep.subr.mxu0 0.0
          %568 = vmatpush1.xpose.msra.mxu0 0.0
          %569 = vmatprep.subr.mxu0 0.0
          %570 = vmatpush1.xpose.msra.mxu0 0.0
          %571 = vmatprep.subr.mxu0 0.0
          %572 = vmatpush1.xpose.msra.mxu0 0.0
          %573 = vmatprep.subr.mxu0 0.0
          %574 = vmatpush1.xpose.msra.mxu0 0.0
          %575 = vmatprep.subr.mxu0 0.0
          %576 = vmatpush1.xpose.msra.mxu0 0.0
          %577 = vmatprep.subr.mxu0 0.0
          %578 = vmatpush1.xpose.msra.mxu0 0.0
          %579 = vmatprep.subr.mxu0 0.0
          %580 = vmatpush1.xpose.msra.mxu0 0.0
          %581 = vmatprep.subr.mxu0 0.0
          %582 = vmatpush1.xpose.msra.mxu0 0.0
          %583 = vmatprep.subr.mxu0 0.0
          %584 = vmatpush1.xpose.msra.mxu0 0.0
          %585 = vmatprep.subr.mxu0 0.0
          %586 = vmatpush1.xpose.msra.mxu0 0.0
          %587 = vmatprep.subr.mxu0 0.0
          %588 = vmatpush1.xpose.msra.mxu0 0.0
          %589 = vmatprep.mubr.f32.mxu0 0.0
          %590 = vmatmul.mubr.f32.gmra.mrb[0].mxu0 %v520
          %v591 = vpop.f32.mrb[0].mxu0
          %v592 = vadd.f32 0.0, %v591
          %v593 = vpop.f32.mrb[0].mxu0
          %594 = vdwg.mxu0
          %v595 = vsel %vm516, %v592, -inf
          %v596 = vld [vmem:[#allocation4] sm:$0xff]
          %v597 = vsel %vm518, %v595, -inf
          %598 = vmax.xlane.f32.xlu0 %v597
          %v599 = vpop.xlane.xlu0 %598
          %v600 = vmax.f32 %v596, %v599
          %v601 = vsub.f32 %v596, %v600
          %v602 = vmul.f32 %v601, 1.442695
          %v603 = vpow.pop %v602
          %605 = vset.pattern.permute.xlu0 0
          %606 = vperm.xlu0 %605, %v600
          %v607 = vpop.permute.xlu0 %606
          %v609 = vsub.f32 %v595, %v607
          %v610 = vmul.f32 %v609, 1.442695
          %v611 = vpow.pop %v610
          %v612 = vld [vmem:[#allocation5] sm:$0xff]
          %v613 = vmul.f32 %v603, %v612
          %v614 = vsel %vm518, %v611, 0.0
          %615 = vadd.xlane.f32.xlu0 %v614
          %v616 = vpop.xlane.xlu0 %615
          %v617 = vadd.f32 %v613, %v616
          %vm618 = vcmask 7168
          %619 = vst.msk [vmem:[#allocation5] sm:$0xff] %vm618, %v617
          %v620 = vld [vmem:[#allocation3] sm:$0xff]
          %622 = vset.pattern.permute.xlu0 0
          %623 = vperm.xlu0 %622, %v603
          %v624 = vpop.permute.xlu0 %623
          %v626 = vmul.f32 %v624, %v620
          %627 = vrot.lane.b32.xlu0 %v505, 96
          %v628 = vpop.permute.xlu0 %627
          %v631 = vsel %vm518, %v611, 0
          %633 = vmatprep.subr.mxu0 0.0
          %634 = vmatpush1.msra.mxu0 %v628
          %635 = vmatprep.subr.mxu0 0.0
          %636 = vmatpush1.msra.mxu0 0.0
          %637 = vmatprep.subr.mxu0 0.0
          %638 = vmatpush1.msra.mxu0 0.0
          %639 = vmatprep.subr.mxu0 0.0
          %640 = vmatpush1.msra.mxu0 0.0
          %641 = vmatprep.subr.mxu0 0.0
          %642 = vmatpush1.msra.mxu0 0.0
          %643 = vmatprep.subr.mxu0 0.0
          %644 = vmatpush1.msra.mxu0 0.0
          %645 = vmatprep.subr.mxu0 0.0
          %646 = vmatpush1.msra.mxu0 0.0
          %647 = vmatprep.subr.mxu0 0.0
          %648 = vmatpush1.msra.mxu0 0.0
          %649 = vmatprep.subr.mxu0 0.0
          %650 = vmatpush1.msra.mxu0 0.0
          %651 = vmatprep.subr.mxu0 0.0
          %652 = vmatpush1.msra.mxu0 0.0
          %653 = vmatprep.subr.mxu0 0.0
          %654 = vmatpush1.msra.mxu0 0.0
          %655 = vmatprep.subr.mxu0 0.0
          %656 = vmatpush1.msra.mxu0 0.0
          %657 = vmatprep.subr.mxu0 0.0
          %658 = vmatpush1.msra.mxu0 0.0
          %659 = vmatprep.subr.mxu0 0.0
          %660 = vmatpush1.msra.mxu0 0.0
          %661 = vmatprep.subr.mxu0 0.0
          %662 = vmatpush1.msra.mxu0 0.0
          %663 = vmatprep.subr.mxu0 0.0
          %664 = vmatpush1.msra.mxu0 0.0
          %665 = vmatprep.subr.mxu0 0.0
          %666 = vmatpush1.msra.mxu0 0.0
          %667 = vmatprep.subr.mxu0 0.0
          %668 = vmatpush1.msra.mxu0 0.0
          %669 = vmatprep.subr.mxu0 0.0
          %670 = vmatpush1.msra.mxu0 0.0
          %671 = vmatprep.subr.mxu0 0.0
          %672 = vmatpush1.msra.mxu0 0.0
          %673 = vmatprep.subr.mxu0 0.0
          %674 = vmatpush1.msra.mxu0 0.0
          %675 = vmatprep.subr.mxu0 0.0
          %676 = vmatpush1.msra.mxu0 0.0
          %677 = vmatprep.subr.mxu0 0.0
          %678 = vmatpush1.msra.mxu0 0.0
          %679 = vmatprep.subr.mxu0 0.0
          %680 = vmatpush1.msra.mxu0 0.0
          %681 = vmatprep.subr.mxu0 0.0
          %682 = vmatpush1.msra.mxu0 0.0
          %683 = vmatprep.subr.mxu0 0.0
          %684 = vmatpush1.msra.mxu0 0.0
          %685 = vmatprep.subr.mxu0 0.0
          %686 = vmatpush1.msra.mxu0 0.0
          %687 = vmatprep.subr.mxu0 0.0
          %688 = vmatpush1.msra.mxu0 0.0
          %689 = vmatprep.subr.mxu0 0.0
          %690 = vmatpush1.msra.mxu0 0.0
          %691 = vmatprep.subr.mxu0 0.0
          %692 = vmatpush1.msra.mxu0 0.0
          %693 = vmatprep.subr.mxu0 0.0
          %694 = vmatpush1.msra.mxu0 0.0
          %695 = vmatprep.subr.mxu0 0.0
          %696 = vmatpush1.msra.mxu0 0.0
          %697 = vmatprep.mubr.f32.mxu0 0.0
          %698 = vmatmul.mubr.f32.gmra.mrb[0].mxu0 %v631
          %v699 = vpop.f32.mrb[0].mxu0
          %v700 = vadd.f32 0.0, %v699
          %v701 = vpop.f32.mrb[0].mxu0
          %702 = vdwg.mxu0
          %v703 = vadd.f32 %v626, %v700
          %704 = vst.msk [vmem:[#allocation3] sm:$0xff] %vm518, %v703
          %705 = vst.msk [vmem:[#allocation4] sm:$0xff] %vm618, %v600
          %v706 = vld [vmem:[#allocation2] sm:$0xff]
          %708 = vrot.lane.b32.xlu0 %v706, 120
          %v709 = vpop.permute.xlu0 %708
          %710 = vrot.lane.b32.xlu0 %v505, 120
          %v711 = vpop.permute.xlu0 %710
          %v712 = vsel %vm518, %v709, 0
          %v714 = vsel %vm518, %v711, 0
          %716 = vmatprep.subr.mxu0 0.0
          %717 = vmatpush1.xpose.msra.mxu0 %v714
          %718 = vmatprep.subr.mxu0 0.0
          %719 = vmatpush1.xpose.msra.mxu0 0.0
          %720 = vmatprep.subr.mxu0 0.0
          %721 = vmatpush1.xpose.msra.mxu0 0.0
          %722 = vmatprep.subr.mxu0 0.0
          %723 = vmatpush1.xpose.msra.mxu0 0.0
          %724 = vmatprep.subr.mxu0 0.0
          %725 = vmatpush1.xpose.msra.mxu0 0.0
          %726 = vmatprep.subr.mxu0 0.0
          %727 = vmatpush1.xpose.msra.mxu0 0.0
          %728 = vmatprep.subr.mxu0 0.0
          %729 = vmatpush1.xpose.msra.mxu0 0.0
          %730 = vmatprep.subr.mxu0 0.0
          %731 = vmatpush1.xpose.msra.mxu0 0.0
          %732 = vmatprep.subr.mxu0 0.0
          %733 = vmatpush1.xpose.msra.mxu0 0.0
          %734 = vmatprep.subr.mxu0 0.0
          %735 = vmatpush1.xpose.msra.mxu0 0.0
          %736 = vmatprep.subr.mxu0 0.0
          %737 = vmatpush1.xpose.msra.mxu0 0.0
          %738 = vmatprep.subr.mxu0 0.0
          %739 = vmatpush1.xpose.msra.mxu0 0.0
          %740 = vmatprep.subr.mxu0 0.0
          %741 = vmatpush1.xpose.msra.mxu0 0.0
          %742 = vmatprep.subr.mxu0 0.0
          %743 = vmatpush1.xpose.msra.mxu0 0.0
          %744 = vmatprep.subr.mxu0 0.0
          %745 = vmatpush1.xpose.msra.mxu0 0.0
          %746 = vmatprep.subr.mxu0 0.0
          %747 = vmatpush1.xpose.msra.mxu0 0.0
          %748 = vmatprep.subr.mxu0 0.0
          %749 = vmatpush1.xpose.msra.mxu0 0.0
          %750 = vmatprep.subr.mxu0 0.0
          %751 = vmatpush1.xpose.msra.mxu0 0.0
          %752 = vmatprep.subr.mxu0 0.0
          %753 = vmatpush1.xpose.msra.mxu0 0.0
          %754 = vmatprep.subr.mxu0 0.0
          %755 = vmatpush1.xpose.msra.mxu0 0.0
          %756 = vmatprep.subr.mxu0 0.0
          %757 = vmatpush1.xpose.msra.mxu0 0.0
          %758 = vmatprep.subr.mxu0 0.0
          %759 = vmatpush1.xpose.msra.mxu0 0.0
          %760 = vmatprep.subr.mxu0 0.0
          %761 = vmatpush1.xpose.msra.mxu0 0.0
          %762 = vmatprep.subr.mxu0 0.0
          %763 = vmatpush1.xpose.msra.mxu0 0.0
          %764 = vmatprep.subr.mxu0 0.0
          %765 = vmatpush1.xpose.msra.mxu0 0.0
          %766 = vmatprep.subr.mxu0 0.0
          %767 = vmatpush1.xpose.msra.mxu0 0.0
          %768 = vmatprep.subr.mxu0 0.0
          %769 = vmatpush1.xpose.msra.mxu0 0.0
          %770 = vmatprep.subr.mxu0 0.0
          %771 = vmatpush1.xpose.msra.mxu0 0.0
          %772 = vmatprep.subr.mxu0 0.0
          %773 = vmatpush1.xpose.msra.mxu0 0.0
          %774 = vmatprep.subr.mxu0 0.0
          %775 = vmatpush1.xpose.msra.mxu0 0.0
          %776 = vmatprep.subr.mxu0 0.0
          %777 = vmatpush1.xpose.msra.mxu0 0.0
          %778 = vmatprep.subr.mxu0 0.0
          %779 = vmatpush1.xpose.msra.mxu0 0.0
          %780 = vmatprep.mubr.f32.mxu0 0.0
          %781 = vmatmul.mubr.f32.gmra.mrb[0].mxu0 %v712
          %v782 = vpop.f32.mrb[0].mxu0
          %v783 = vadd.f32 0.0, %v782
          %v784 = vpop.f32.mrb[0].mxu0
          %785 = vdwg.mxu0
          %v786 = vsel %vm516, %v783, -inf
          %s787 = scalar_lea.vmem [#allocation4], 8
          %v788 = vld [vmem:[%s787] sm:$0xff]
          %v789 = vsel %vm518, %v786, -inf
          %790 = vmax.xlane.f32.xlu0 %v789
          %v791 = vpop.xlane.xlu0 %790
          %v792 = vmax.f32 %v788, %v791
          %v793 = vsub.f32 %v788, %v792
          %v794 = vmul.f32 %v793, 1.442695
          %v795 = vpow.pop %v794
          %797 = vset.pattern.permute.xlu0 0
          %798 = vperm.xlu0 %797, %v792
          %v799 = vpop.permute.xlu0 %798
          %v801 = vsub.f32 %v786, %v799
          %v802 = vmul.f32 %v801, 1.442695
          %v803 = vpow.pop %v802
          %s804 = scalar_lea.vmem [#allocation5], 8
          %v805 = vld [vmem:[%s804] sm:$0xff]
          %v806 = vmul.f32 %v795, %v805
          %v807 = vsel %vm518, %v803, 0.0
          %808 = vadd.xlane.f32.xlu0 %v807
          %v809 = vpop.xlane.xlu0 %808
          %v810 = vadd.f32 %v806, %v809
          %811 = vst.msk [vmem:[%s804] sm:$0xff] %vm618, %v810
          %s812 = scalar_lea.vmem [#allocation3], 8
          %v813 = vld [vmem:[%s812] sm:$0xff]
          %815 = vset.pattern.permute.xlu0 0
          %816 = vperm.xlu0 %815, %v795
          %v817 = vpop.permute.xlu0 %816
          %v819 = vmul.f32 %v817, %v813
          %820 = vrot.lane.b32.xlu0 %v505, 88
          %v821 = vpop.permute.xlu0 %820
          %v824 = vsel %vm518, %v803, 0
          %826 = vmatprep.subr.mxu0 0.0
          %827 = vmatpush1.msra.mxu0 %v821
          %828 = vmatprep.subr.mxu0 0.0
          %829 = vmatpush1.msra.mxu0 0.0
          %830 = vmatprep.subr.mxu0 0.0
          %831 = vmatpush1.msra.mxu0 0.0
          %832 = vmatprep.subr.mxu0 0.0
          %833 = vmatpush1.msra.mxu0 0.0
          %834 = vmatprep.subr.mxu0 0.0
          %835 = vmatpush1.msra.mxu0 0.0
          %836 = vmatprep.subr.mxu0 0.0
          %837 = vmatpush1.msra.mxu0 0.0
          %838 = vmatprep.subr.mxu0 0.0
          %839 = vmatpush1.msra.mxu0 0.0
          %840 = vmatprep.subr.mxu0 0.0
          %841 = vmatpush1.msra.mxu0 0.0
          %842 = vmatprep.subr.mxu0 0.0
          %843 = vmatpush1.msra.mxu0 0.0
          %844 = vmatprep.subr.mxu0 0.0
          %845 = vmatpush1.msra.mxu0 0.0
          %846 = vmatprep.subr.mxu0 0.0
          %847 = vmatpush1.msra.mxu0 0.0
          %848 = vmatprep.subr.mxu0 0.0
          %849 = vmatpush1.msra.mxu0 0.0
          %850 = vmatprep.subr.mxu0 0.0
          %851 = vmatpush1.msra.mxu0 0.0
          %852 = vmatprep.subr.mxu0 0.0
          %853 = vmatpush1.msra.mxu0 0.0
          %854 = vmatprep.subr.mxu0 0.0
          %855 = vmatpush1.msra.mxu0 0.0
          %856 = vmatprep.subr.mxu0 0.0
          %857 = vmatpush1.msra.mxu0 0.0
          %858 = vmatprep.subr.mxu0 0.0
          %859 = vmatpush1.msra.mxu0 0.0
          %860 = vmatprep.subr.mxu0 0.0
          %861 = vmatpush1.msra.mxu0 0.0
          %862 = vmatprep.subr.mxu0 0.0
          %863 = vmatpush1.msra.mxu0 0.0
          %864 = vmatprep.subr.mxu0 0.0
          %865 = vmatpush1.msra.mxu0 0.0
          %866 = vmatprep.subr.mxu0 0.0
          %867 = vmatpush1.msra.mxu0 0.0
          %868 = vmatprep.subr.mxu0 0.0
          %869 = vmatpush1.msra.mxu0 0.0
          %870 = vmatprep.subr.mxu0 0.0
          %871 = vmatpush1.msra.mxu0 0.0
          %872 = vmatprep.subr.mxu0 0.0
          %873 = vmatpush1.msra.mxu0 0.0
          %874 = vmatprep.subr.mxu0 0.0
          %875 = vmatpush1.msra.mxu0 0.0
          %876 = vmatprep.subr.mxu0 0.0
          %877 = vmatpush1.msra.mxu0 0.0
          %878 = vmatprep.subr.mxu0 0.0
          %879 = vmatpush1.msra.mxu0 0.0
          %880 = vmatprep.subr.mxu0 0.0
          %881 = vmatpush1.msra.mxu0 0.0
          %882 = vmatprep.subr.mxu0 0.0
          %883 = vmatpush1.msra.mxu0 0.0
          %884 = vmatprep.subr.mxu0 0.0
          %885 = vmatpush1.msra.mxu0 0.0
          %886 = vmatprep.subr.mxu0 0.0
          %887 = vmatpush1.msra.mxu0 0.0
          %888 = vmatprep.subr.mxu0 0.0
          %889 = vmatpush1.msra.mxu0 0.0
          %890 = vmatprep.mubr.f32.mxu0 0.0
          %891 = vmatmul.mubr.f32.gmra.mrb[0].mxu0 %v824
          %v892 = vpop.f32.mrb[0].mxu0
          %v893 = vadd.f32 0.0, %v892
          %v894 = vpop.f32.mrb[0].mxu0
          %895 = vdwg.mxu0
          %v896 = vadd.f32 %v819, %v893
          %897 = vst.msk [vmem:[%s812] sm:$0xff] %vm518, %v896
          %898 = vst.msk [vmem:[%s787] sm:$0xff] %vm618, %v792
          %v899 = vld [vmem:[#allocation2] sm:$0xff]
          %901 = vrot.lane.b32.xlu0 %v899, 112
          %v902 = vpop.permute.xlu0 %901
          %903 = vrot.lane.b32.xlu0 %v505, 112
          %v904 = vpop.permute.xlu0 %903
          %v905 = vsel %vm518, %v902, 0
          %v907 = vsel %vm518, %v904, 0
          %909 = vmatprep.subr.mxu0 0.0
          %910 = vmatpush1.xpose.msra.mxu0 %v907
          %911 = vmatprep.subr.mxu0 0.0
          %912 = vmatpush1.xpose.msra.mxu0 0.0
          %913 = vmatprep.subr.mxu0 0.0
          %914 = vmatpush1.xpose.msra.mxu0 0.0
          %915 = vmatprep.subr.mxu0 0.0
          %916 = vmatpush1.xpose.msra.mxu0 0.0
          %917 = vmatprep.subr.mxu0 0.0
          %918 = vmatpush1.xpose.msra.mxu0 0.0
          %919 = vmatprep.subr.mxu0 0.0
          %920 = vmatpush1.xpose.msra.mxu0 0.0
          %921 = vmatprep.subr.mxu0 0.0
          %922 = vmatpush1.xpose.msra.mxu0 0.0
          %923 = vmatprep.subr.mxu0 0.0
          %924 = vmatpush1.xpose.msra.mxu0 0.0
          %925 = vmatprep.subr.mxu0 0.0
          %926 = vmatpush1.xpose.msra.mxu0 0.0
          %927 = vmatprep.subr.mxu0 0.0
          %928 = vmatpush1.xpose.msra.mxu0 0.0
          %929 = vmatprep.subr.mxu0 0.0
          %930 = vmatpush1.xpose.msra.mxu0 0.0
          %931 = vmatprep.subr.mxu0 0.0
          %932 = vmatpush1.xpose.msra.mxu0 0.0
          %933 = vmatprep.subr.mxu0 0.0
          %934 = vmatpush1.xpose.msra.mxu0 0.0
          %935 = vmatprep.subr.mxu0 0.0
          %936 = vmatpush1.xpose.msra.mxu0 0.0
          %937 = vmatprep.subr.mxu0 0.0
          %938 = vmatpush1.xpose.msra.mxu0 0.0
          %939 = vmatprep.subr.mxu0 0.0
          %940 = vmatpush1.xpose.msra.mxu0 0.0
          %941 = vmatprep.subr.mxu0 0.0
          %942 = vmatpush1.xpose.msra.mxu0 0.0
          %943 = vmatprep.subr.mxu0 0.0
          %944 = vmatpush1.xpose.msra.mxu0 0.0
          %945 = vmatprep.subr.mxu0 0.0
          %946 = vmatpush1.xpose.msra.mxu0 0.0
          %947 = vmatprep.subr.mxu0 0.0
          %948 = vmatpush1.xpose.msra.mxu0 0.0
          %949 = vmatprep.subr.mxu0 0.0
          %950 = vmatpush1.xpose.msra.mxu0 0.0
          %951 = vmatprep.subr.mxu0 0.0
          %952 = vmatpush1.xpose.msra.mxu0 0.0
          %953 = vmatprep.subr.mxu0 0.0
          %954 = vmatpush1.xpose.msra.mxu0 0.0
          %955 = vmatprep.subr.mxu0 0.0
          %956 = vmatpush1.xpose.msra.mxu0 0.0
          %957 = vmatprep.subr.mxu0 0.0
          %958 = vmatpush1.xpose.msra.mxu0 0.0
          %959 = vmatprep.subr.mxu0 0.0
          %960 = vmatpush1.xpose.msra.mxu0 0.0
          %961 = vmatprep.subr.mxu0 0.0
          %962 = vmatpush1.xpose.msra.mxu0 0.0
          %963 = vmatprep.subr.mxu0 0.0
          %964 = vmatpush1.xpose.msra.mxu0 0.0
          %965 = vmatprep.subr.mxu0 0.0
          %966 = vmatpush1.xpose.msra.mxu0 0.0
          %967 = vmatprep.subr.mxu0 0.0
          %968 = vmatpush1.xpose.msra.mxu0 0.0
          %969 = vmatprep.subr.mxu0 0.0
          %970 = vmatpush1.xpose.msra.mxu0 0.0
          %971 = vmatprep.subr.mxu0 0.0
          %972 = vmatpush1.xpose.msra.mxu0 0.0
          %973 = vmatprep.mubr.f32.mxu0 0.0
          %974 = vmatmul.mubr.f32.gmra.mrb[0].mxu0 %v905
          %v975 = vpop.f32.mrb[0].mxu0
          %v976 = vadd.f32 0.0, %v975
          %v977 = vpop.f32.mrb[0].mxu0
          %978 = vdwg.mxu0
          %v979 = vsel %vm516, %v976, -inf
          %s980 = scalar_lea.vmem [#allocation4], 16
          %v981 = vld [vmem:[%s980] sm:$0xff]
          %v982 = vsel %vm518, %v979, -inf
          %983 = vmax.xlane.f32.xlu0 %v982
          %v984 = vpop.xlane.xlu0 %983
          %v985 = vmax.f32 %v981, %v984
          %v986 = vsub.f32 %v981, %v985
          %v987 = vmul.f32 %v986, 1.442695
          %v988 = vpow.pop %v987
          %990 = vset.pattern.permute.xlu0 0
          %991 = vperm.xlu0 %990, %v985
          %v992 = vpop.permute.xlu0 %991
          %v994 = vsub.f32 %v979, %v992
          %v995 = vmul.f32 %v994, 1.442695
          %v996 = vpow.pop %v995
          %s997 = scalar_lea.vmem [#allocation5], 16
          %v998 = vld [vmem:[%s997] sm:$0xff]
          %v999 = vmul.f32 %v988, %v998
          %v1000 = vsel %vm518, %v996, 0.0
          %1001 = vadd.xlane.f32.xlu0 %v1000
          %v1002 = vpop.xlane.xlu0 %1001
          %v1003 = vadd.f32 %v999, %v1002
          %1004 = vst.msk [vmem:[%s997] sm:$0xff] %vm618, %v1003
          %s1005 = scalar_lea.vmem [#allocation3], 16
          %v1006 = vld [vmem:[%s1005] sm:$0xff]
          %1008 = vset.pattern.permute.xlu0 0
          %1009 = vperm.xlu0 %1008, %v988
          %v1010 = vpop.permute.xlu0 %1009
          %v1012 = vmul.f32 %v1010, %v1006
          %1013 = vrot.lane.b32.xlu0 %v505, 80
          %v1014 = vpop.permute.xlu0 %1013
          %v1017 = vsel %vm518, %v996, 0
          %1019 = vmatprep.subr.mxu0 0.0
          %1020 = vmatpush1.msra.mxu0 %v1014
          %1021 = vmatprep.subr.mxu0 0.0
          %1022 = vmatpush1.msra.mxu0 0.0
          %1023 = vmatprep.subr.mxu0 0.0
          %1024 = vmatpush1.msra.mxu0 0.0
          %1025 = vmatprep.subr.mxu0 0.0
          %1026 = vmatpush1.msra.mxu0 0.0
          %1027 = vmatprep.subr.mxu0 0.0
          %1028 = vmatpush1.msra.mxu0 0.0
          %1029 = vmatprep.subr.mxu0 0.0
          %1030 = vmatpush1.msra.mxu0 0.0
          %1031 = vmatprep.subr.mxu0 0.0
          %1032 = vmatpush1.msra.mxu0 0.0
          %1033 = vmatprep.subr.mxu0 0.0
          %1034 = vmatpush1.msra.mxu0 0.0
          %1035 = vmatprep.subr.mxu0 0.0
          %1036 = vmatpush1.msra.mxu0 0.0
          %1037 = vmatprep.subr.mxu0 0.0
          %1038 = vmatpush1.msra.mxu0 0.0
          %1039 = vmatprep.subr.mxu0 0.0
          %1040 = vmatpush1.msra.mxu0 0.0
          %1041 = vmatprep.subr.mxu0 0.0
          %1042 = vmatpush1.msra.mxu0 0.0
          %1043 = vmatprep.subr.mxu0 0.0
          %1044 = vmatpush1.msra.mxu0 0.0
          %1045 = vmatprep.subr.mxu0 0.0
          %1046 = vmatpush1.msra.mxu0 0.0
          %1047 = vmatprep.subr.mxu0 0.0
          %1048 = vmatpush1.msra.mxu0 0.0
          %1049 = vmatprep.subr.mxu0 0.0
          %1050 = vmatpush1.msra.mxu0 0.0
          %1051 = vmatprep.subr.mxu0 0.0
          %1052 = vmatpush1.msra.mxu0 0.0
          %1053 = vmatprep.subr.mxu0 0.0
          %1054 = vmatpush1.msra.mxu0 0.0
          %1055 = vmatprep.subr.mxu0 0.0
          %1056 = vmatpush1.msra.mxu0 0.0
          %1057 = vmatprep.subr.mxu0 0.0
          %1058 = vmatpush1.msra.mxu0 0.0
          %1059 = vmatprep.subr.mxu0 0.0
          %1060 = vmatpush1.msra.mxu0 0.0
          %1061 = vmatprep.subr.mxu0 0.0
          %1062 = vmatpush1.msra.mxu0 0.0
          %1063 = vmatprep.subr.mxu0 0.0
          %1064 = vmatpush1.msra.mxu0 0.0
          %1065 = vmatprep.subr.mxu0 0.0
          %1066 = vmatpush1.msra.mxu0 0.0
          %1067 = vmatprep.subr.mxu0 0.0
          %1068 = vmatpush1.msra.mxu0 0.0
          %1069 = vmatprep.subr.mxu0 0.0
          %1070 = vmatpush1.msra.mxu0 0.0
          %1071 = vmatprep.subr.mxu0 0.0
          %1072 = vmatpush1.msra.mxu0 0.0
          %1073 = vmatprep.subr.mxu0 0.0
          %1074 = vmatpush1.msra.mxu0 0.0
          %1075 = vmatprep.subr.mxu0 0.0
          %1076 = vmatpush1.msra.mxu0 0.0
          %1077 = vmatprep.subr.mxu0 0.0
          %1078 = vmatpush1.msra.mxu0 0.0
          %1079 = vmatprep.subr.mxu0 0.0
          %1080 = vmatpush1.msra.mxu0 0.0
          %1081 = vmatprep.subr.mxu0 0.0
          %1082 = vmatpush1.msra.mxu0 0.0
          %1083 = vmatprep.mubr.f32.mxu0 0.0
          %1084 = vmatmul.mubr.f32.gmra.mrb[0].mxu0 %v1017
          %v1085 = vpop.f32.mrb[0].mxu0
          %v1086 = vadd.f32 0.0, %v1085
          %v1087 = vpop.f32.mrb[0].mxu0
          %1088 = vdwg.mxu0
          %v1089 = vadd.f32 %v1012, %v1086
          %1090 = vst.msk [vmem:[%s1005] sm:$0xff] %vm518, %v1089
          %1091 = vst.msk [vmem:[%s980] sm:$0xff] %vm618, %v985
          %v1092 = vld [vmem:[#allocation2] sm:$0xff]
          %1094 = vrot.lane.b32.xlu0 %v1092, 104
          %v1095 = vpop.permute.xlu0 %1094
          %1096 = vrot.lane.b32.xlu0 %v505, 104
          %v1097 = vpop.permute.xlu0 %1096
          %v1098 = vsel %vm518, %v1095, 0
          %v1100 = vsel %vm518, %v1097, 0
          %1102 = vmatprep.subr.mxu0 0.0
          %1103 = vmatpush1.xpose.msra.mxu0 %v1100
          %1104 = vmatprep.subr.mxu0 0.0
          %1105 = vmatpush1.xpose.msra.mxu0 0.0
          %1106 = vmatprep.subr.mxu0 0.0
          %1107 = vmatpush1.xpose.msra.mxu0 0.0
          %1108 = vmatprep.subr.mxu0 0.0
          %1109 = vmatpush1.xpose.msra.mxu0 0.0
          %1110 = vmatprep.subr.mxu0 0.0
          %1111 = vmatpush1.xpose.msra.mxu0 0.0
          %1112 = vmatprep.subr.mxu0 0.0
          %1113 = vmatpush1.xpose.msra.mxu0 0.0
          %1114 = vmatprep.subr.mxu0 0.0
          %1115 = vmatpush1.xpose.msra.mxu0 0.0
          %1116 = vmatprep.subr.mxu0 0.0
          %1117 = vmatpush1.xpose.msra.mxu0 0.0
          %1118 = vmatprep.subr.mxu0 0.0
          %1119 = vmatpush1.xpose.msra.mxu0 0.0
          %1120 = vmatprep.subr.mxu0 0.0
          %1121 = vmatpush1.xpose.msra.mxu0 0.0
          %1122 = vmatprep.subr.mxu0 0.0
          %1123 = vmatpush1.xpose.msra.mxu0 0.0
          %1124 = vmatprep.subr.mxu0 0.0
          %1125 = vmatpush1.xpose.msra.mxu0 0.0
          %1126 = vmatprep.subr.mxu0 0.0
          %1127 = vmatpush1.xpose.msra.mxu0 0.0
          %1128 = vmatprep.subr.mxu0 0.0
          %1129 = vmatpush1.xpose.msra.mxu0 0.0
          %1130 = vmatprep.subr.mxu0 0.0
          %1131 = vmatpush1.xpose.msra.mxu0 0.0
          %1132 = vmatprep.subr.mxu0 0.0
          %1133 = vmatpush1.xpose.msra.mxu0 0.0
          %1134 = vmatprep.subr.mxu0 0.0
          %1135 = vmatpush1.xpose.msra.mxu0 0.0
          %1136 = vmatprep.subr.mxu0 0.0
          %1137 = vmatpush1.xpose.msra.mxu0 0.0
          %1138 = vmatprep.subr.mxu0 0.0
          %1139 = vmatpush1.xpose.msra.mxu0 0.0
          %1140 = vmatprep.subr.mxu0 0.0
          %1141 = vmatpush1.xpose.msra.mxu0 0.0
          %1142 = vmatprep.subr.mxu0 0.0
          %1143 = vmatpush1.xpose.msra.mxu0 0.0
          %1144 = vmatprep.subr.mxu0 0.0
          %1145 = vmatpush1.xpose.msra.mxu0 0.0
          %1146 = vmatprep.subr.mxu0 0.0
          %1147 = vmatpush1.xpose.msra.mxu0 0.0
          %1148 = vmatprep.subr.mxu0 0.0
          %1149 = vmatpush1.xpose.msra.mxu0 0.0
          %1150 = vmatprep.subr.mxu0 0.0
          %1151 = vmatpush1.xpose.msra.mxu0 0.0
          %1152 = vmatprep.subr.mxu0 0.0
          %1153 = vmatpush1.xpose.msra.mxu0 0.0
          %1154 = vmatprep.subr.mxu0 0.0
          %1155 = vmatpush1.xpose.msra.mxu0 0.0
          %1156 = vmatprep.subr.mxu0 0.0
          %1157 = vmatpush1.xpose.msra.mxu0 0.0
          %1158 = vmatprep.subr.mxu0 0.0
          %1159 = vmatpush1.xpose.msra.mxu0 0.0
          %1160 = vmatprep.subr.mxu0 0.0
          %1161 = vmatpush1.xpose.msra.mxu0 0.0
          %1162 = vmatprep.subr.mxu0 0.0
          %1163 = vmatpush1.xpose.msra.mxu0 0.0
          %1164 = vmatprep.subr.mxu0 0.0
          %1165 = vmatpush1.xpose.msra.mxu0 0.0
          %1166 = vmatprep.mubr.f32.mxu0 0.0
          %1167 = vmatmul.mubr.f32.gmra.mrb[0].mxu0 %v1098
          %v1168 = vpop.f32.mrb[0].mxu0
          %v1169 = vadd.f32 0.0, %v1168
          %v1170 = vpop.f32.mrb[0].mxu0
          %1171 = vdwg.mxu0
          %v1172 = vsel %vm516, %v1169, -inf
          %s1173 = scalar_lea.vmem [#allocation4], 24
          %v1174 = vld [vmem:[%s1173] sm:$0xff]
          %v1175 = vsel %vm518, %v1172, -inf
          %1176 = vmax.xlane.f32.xlu0 %v1175
          %v1177 = vpop.xlane.xlu0 %1176
          %v1178 = vmax.f32 %v1174, %v1177
          %v1179 = vsub.f32 %v1174, %v1178
          %v1180 = vmul.f32 %v1179, 1.442695
          %v1181 = vpow.pop %v1180
          %1183 = vset.pattern.permute.xlu0 0
          %1184 = vperm.xlu0 %1183, %v1178
          %v1185 = vpop.permute.xlu0 %1184
          %v1187 = vsub.f32 %v1172, %v1185
          %v1188 = vmul.f32 %v1187, 1.442695
          %v1189 = vpow.pop %v1188
          %s1190 = scalar_lea.vmem [#allocation5], 24
          %v1191 = vld [vmem:[%s1190] sm:$0xff]
          %v1192 = vmul.f32 %v1181, %v1191
          %v1193 = vsel %vm518, %v1189, 0.0
          %1194 = vadd.xlane.f32.xlu0 %v1193
          %v1195 = vpop.xlane.xlu0 %1194
          %v1196 = vadd.f32 %v1192, %v1195
          %1197 = vst.msk [vmem:[%s1190] sm:$0xff] %vm618, %v1196
          %s1198 = scalar_lea.vmem [#allocation3], 24
          %v1199 = vld [vmem:[%s1198] sm:$0xff]
          %1201 = vset.pattern.permute.xlu0 0
          %1202 = vperm.xlu0 %1201, %v1181
          %v1203 = vpop.permute.xlu0 %1202
          %v1205 = vmul.f32 %v1203, %v1199
          %1206 = vrot.lane.b32.xlu0 %v505, 72
          %v1207 = vpop.permute.xlu0 %1206
          %v1210 = vsel %vm518, %v1189, 0
          %1212 = vmatprep.subr.mxu0 0.0
          %1213 = vmatpush1.msra.mxu0 %v1207
          %1214 = vmatprep.subr.mxu0 0.0
          %1215 = vmatpush1.msra.mxu0 0.0
          %1216 = vmatprep.subr.mxu0 0.0
          %1217 = vmatpush1.msra.mxu0 0.0
          %1218 = vmatprep.subr.mxu0 0.0
          %1219 = vmatpush1.msra.mxu0 0.0
          %1220 = vmatprep.subr.mxu0 0.0
          %1221 = vmatpush1.msra.mxu0 0.0
          %1222 = vmatprep.subr.mxu0 0.0
          %1223 = vmatpush1.msra.mxu0 0.0
          %1224 = vmatprep.subr.mxu0 0.0
          %1225 = vmatpush1.msra.mxu0 0.0
          %1226 = vmatprep.subr.mxu0 0.0
          %1227 = vmatpush1.msra.mxu0 0.0
          %1228 = vmatprep.subr.mxu0 0.0
          %1229 = vmatpush1.msra.mxu0 0.0
          %1230 = vmatprep.subr.mxu0 0.0
          %1231 = vmatpush1.msra.mxu0 0.0
          %1232 = vmatprep.subr.mxu0 0.0
          %1233 = vmatpush1.msra.mxu0 0.0
          %1234 = vmatprep.subr.mxu0 0.0
          %1235 = vmatpush1.msra.mxu0 0.0
          %1236 = vmatprep.subr.mxu0 0.0
          %1237 = vmatpush1.msra.mxu0 0.0
          %1238 = vmatprep.subr.mxu0 0.0
          %1239 = vmatpush1.msra.mxu0 0.0
          %1240 = vmatprep.subr.mxu0 0.0
          %1241 = vmatpush1.msra.mxu0 0.0
          %1242 = vmatprep.subr.mxu0 0.0
          %1243 = vmatpush1.msra.mxu0 0.0
          %1244 = vmatprep.subr.mxu0 0.0
          %1245 = vmatpush1.msra.mxu0 0.0
          %1246 = vmatprep.subr.mxu0 0.0
          %1247 = vmatpush1.msra.mxu0 0.0
          %1248 = vmatprep.subr.mxu0 0.0
          %1249 = vmatpush1.msra.mxu0 0.0
          %1250 = vmatprep.subr.mxu0 0.0
          %1251 = vmatpush1.msra.mxu0 0.0
          %1252 = vmatprep.subr.mxu0 0.0
          %1253 = vmatpush1.msra.mxu0 0.0
          %1254 = vmatprep.subr.mxu0 0.0
          %1255 = vmatpush1.msra.mxu0 0.0
          %1256 = vmatprep.subr.mxu0 0.0
          %1257 = vmatpush1.msra.mxu0 0.0
          %1258 = vmatprep.subr.mxu0 0.0
          %1259 = vmatpush1.msra.mxu0 0.0
          %1260 = vmatprep.subr.mxu0 0.0
          %1261 = vmatpush1.msra.mxu0 0.0
          %1262 = vmatprep.subr.mxu0 0.0
          %1263 = vmatpush1.msra.mxu0 0.0
          %1264 = vmatprep.subr.mxu0 0.0
          %1265 = vmatpush1.msra.mxu0 0.0
          %1266 = vmatprep.subr.mxu0 0.0
          %1267 = vmatpush1.msra.mxu0 0.0
          %1268 = vmatprep.subr.mxu0 0.0
          %1269 = vmatpush1.msra.mxu0 0.0
          %1270 = vmatprep.subr.mxu0 0.0
          %1271 = vmatpush1.msra.mxu0 0.0
          %1272 = vmatprep.subr.mxu0 0.0
          %1273 = vmatpush1.msra.mxu0 0.0
          %1274 = vmatprep.subr.mxu0 0.0
          %1275 = vmatpush1.msra.mxu0 0.0
          %1276 = vmatprep.mubr.f32.mxu0 0.0
          %1277 = vmatmul.mubr.f32.gmra.mrb[0].mxu0 %v1210
          %v1278 = vpop.f32.mrb[0].mxu0
          %v1279 = vadd.f32 0.0, %v1278
          %v1280 = vpop.f32.mrb[0].mxu0
          %1281 = vdwg.mxu0
          %v1282 = vadd.f32 %v1205, %v1279
          %1283 = vst.msk [vmem:[%s1198] sm:$0xff] %vm518, %v1282
          %1284 = vst.msk [vmem:[%s1173] sm:$0xff] %vm618, %v1178
        $region56: #{tpu_custom_call.1} parent=35 // pred_fallthru
          _
        // Predicated region
        $region57: #{tpu_custom_call.1} parent=35 // pred_check
          %p1285 = pneg %p293
        $region58: #{tpu_custom_call.1} parent=35 // pred_check_branch
          %1287 = sbr.rel (%p1285) target = $region60
        $region59: #{tpu_custom_call.1} parent=35 // pred_region
          %v1288 = vld [vmem:[#allocation5] sm:$0xff]
          %v1289 = vrcp.pop %v1288
          %v1290 = vmul.f32 1.0, %v1289
          %v1291 = vld [vmem:[#allocation3] sm:$0xff]
          %1293 = vset.pattern.permute.xlu0 0
          %1294 = vperm.xlu0 %1293, %v1290
          %v1295 = vpop.permute.xlu0 %1294
          %v1297 = vmul.f32 %v1291, %v1295
          %s1298 = scalar_lea.vmem [#allocation5], 8
          %v1299 = vld [vmem:[%s1298] sm:$0xff]
          %v1300 = vrcp.pop %v1299
          %v1301 = vmul.f32 1.0, %v1300
          %s1302 = scalar_lea.vmem [#allocation3], 8
          %v1303 = vld [vmem:[%s1302] sm:$0xff]
          %1305 = vset.pattern.permute.xlu0 0
          %1306 = vperm.xlu0 %1305, %v1301
          %v1307 = vpop.permute.xlu0 %1306
          %v1309 = vmul.f32 %v1303, %v1307
          %s1310 = scalar_lea.vmem [#allocation5], 16
          %v1311 = vld [vmem:[%s1310] sm:$0xff]
          %v1312 = vrcp.pop %v1311
          %v1313 = vmul.f32 1.0, %v1312
          %s1314 = scalar_lea.vmem [#allocation3], 16
          %v1315 = vld [vmem:[%s1314] sm:$0xff]
          %1317 = vset.pattern.permute.xlu0 0
          %1318 = vperm.xlu0 %1317, %v1313
          %v1319 = vpop.permute.xlu0 %1318
          %v1321 = vmul.f32 %v1315, %v1319
          %s1322 = scalar_lea.vmem [#allocation5], 24
          %v1323 = vld [vmem:[%s1322] sm:$0xff]
          %v1324 = vrcp.pop %v1323
          %v1325 = vmul.f32 1.0, %v1324
          %s1326 = scalar_lea.vmem [#allocation3], 24
          %v1327 = vld [vmem:[%s1326] sm:$0xff]
          %1329 = vset.pattern.permute.xlu0 0
          %1330 = vperm.xlu0 %1329, %v1325
          %v1331 = vpop.permute.xlu0 %1330
          %v1333 = vmul.f32 %v1327, %v1331
          %1335 = vrot.lane.b32.xlu0 %v1309, 8
          %v1336 = vpop.permute.xlu0 %1335
          %1339 = vrot.lane.b32.xlu0 %v1321, 16
          %v1340 = vpop.permute.xlu0 %1339
          %1343 = vrot.lane.b32.xlu0 %v1333, 24
          %v1344 = vpop.permute.xlu0 %1343
          %vm1346 = vcmask 64512
          %v1347 = vsel %vm1346, %v1297, %v1336
          %vm1348 = vcmask 130048
          %v1349 = vsel %vm1348, %v1347, %v1340
          %vm1350 = vcmask 195584
          %v1351 = vsel %vm1350, %v1349, %v1344
          %vm1352 = vcmask 261120
          %1353 = vst.msk [vmem:[%s290] sm:$0xff] %vm1352, %v1351
        $region60: #{tpu_custom_call.1} parent=35 // pred_fallthru
          _
        %s1354 = sand.u32 %s151, 1
        %s1355 = scalar_lea.sflag [#allocation8], %s1354
        %s1356 = sand.u32 %s151, 1
        %s1357 = smul.addr %s1356, 8
        %s1358 = scalar_lea.vmem [#allocation12], %s1357
        // Predicated region
        $region61: #{tpu_custom_call.1} parent=35 // pred_check
          %p1359 = pneg %p161
        $region62: #{tpu_custom_call.1} parent=35 // pred_check_branch
          %1361 = sbr.rel (%p1359) target = $region64
        $region63: #{tpu_custom_call.1} parent=35 // pred_region
          %s1363 = ssub.s32 128, 128
          %1364 = vsyncadd %s1355, %s1363
          %s1365 = sadd.s32 %s30, %s29
          %s1366 = smul.addr %s1365, 128
          %s1367 = scalar_lea.hbm %s4, %s1366
          %s1369 = sshll.u32 %s1358, 4
          %s1370 = int_to_ptr.vmem [resolvable:$true] %s1369
          %1372 = dma.vmem_to_hbm [thread:$0]  %s1370, 128, %s1367, %s1355
        $region64: #{tpu_custom_call.1} parent=35 // pred_fallthru
          _
      $region36: #{tpu_custom_call.1} parent=5 // pred_fallthru
        _
      %p1373 = scmp.le.s32.totalorder 2, %s19
      // Predicated region
      $region65: #{tpu_custom_call.1} parent=5 // pred_check
        %p1374 = pneg %p1373
      $region66: #{tpu_custom_call.1} parent=5 // pred_check_branch
        %1376 = sbr.rel (%p1374) target = $region68
      $region67: #{tpu_custom_call.1} parent=5 // pred_region
        %s1377 = ssub.s32 %s19, 2
        // Predicated region
        $region69: #{tpu_custom_call.1} parent=67 // pred_check
          %p1378 = pneg %p167
        $region70: #{tpu_custom_call.1} parent=67 // pred_check_branch
          %1380 = sbr.rel (%p1378) target = $region72
        $region71: #{tpu_custom_call.1} parent=67 // pred_region
          %s1381 = sand.u32 %s152, 1
          %s1382 = scalar_lea.sflag [#allocation8], %s1381
          %s1383 = sand.u32 %s152, 1
          %s1384 = smul.addr %s1383, 8
          %s1385 = scalar_lea.vmem [#allocation12], %s1384
          %1386 = dma.done %s1382, 128
        $region72: #{tpu_custom_call.1} parent=67 // pred_fallthru
          _
      $region68: #{tpu_custom_call.1} parent=5 // pred_fallthru
        _
    $region6: #{tpu_custom_call.1} parent=1 // loop_footer
      %s23 = sadd.s32 1, %s19
    $region7: #{tpu_custom_call.1} parent=1 // loop_footer_branch
      %18 = sbr.rel target = $region3
    $region8: #{tpu_custom_call.1} parent=1 // loop_exit
      _
    %1387 = vsyncpa [#allocation7], 1
    %s1388 = scalar_lea.sflag [#allocation7], 1
    %1389 = vsyncpa %s1388, 1
    %1390 = vsyncpa [#allocation10], 1
    %s1391 = scalar_lea.sflag [#allocation10], 1
    %1392 = vsyncpa %s1391, 1
    %1393 = vsyncpa [#allocation8], 1
    %s1394 = scalar_lea.sflag [#allocation8], 1
    %1395 = vsyncpa %s1394, 1

</llo_original>
